<compile_context>
chip_gen: v5e
topology: v5e:2x2
jax: 0.10.0
libtpu: 0.0.40
codegen_flags: <defaults>
</compile_context>

<pallas_src>
import math

import jax
import jax.numpy as jnp
from jax.experimental import pallas as pl
from jax.experimental.pallas import tpu as pltpu


def mlp_kernel(x_ref, w1_ref, b1_ref, w2_ref, b2_ref, w3_ref, b3_ref, o_ref):
    # Layer 1: (T,14) @ (14,128) + (1,128) -> sigmoid   (MXU + VPU/EUP)
    h1 = jnp.dot(x_ref[...], w1_ref[...], preferred_element_type=jnp.float32)
    h1 = jax.nn.sigmoid(h1 + b1_ref[...])
    # Layer 2: (T,128) @ (128,64) + (1,64) -> sigmoid   (MXU + VPU/EUP)
    h2 = jnp.dot(h1, w2_ref[...], preferred_element_type=jnp.float32)
    h2 = jax.nn.sigmoid(h2 + b2_ref[...])
    # Layer 3: out_features == 1 -> broadcast-multiply + lane reduction on the
    # VPU/XLU. The reduction result is a (T,) vector living on the lane axis,
    # so the final store is a dense, unmasked (1, T) row.
    h3 = jnp.sum(h2 * w3_ref[...], axis=-1)            # (T,)
    y = jax.nn.sigmoid(h3[None, :] + b3_ref[...])       # (1, T)
    o_ref[...] = y.astype(o_ref.dtype)


def _round_up(x, m):
    return ((x + m - 1) // m) * m


def mlp_forward(x, w1, b1, w2, b2, w3, b3, *, tile_b=2048):
    """x: (B, 14); w1: (14,128); b1: (1,128); w2: (128,64); b2: (1,64);
    w3: (64,1); b3: (1,1). Returns (B, 1)."""
    B, F = x.shape

    # Adaptive tile: big enough to pipeline well, never larger than needed.
    tile_b = min(tile_b, _round_up(B, 128))
    num_tiles = pl.cdiv(B, tile_b)
    Bp = num_tiles * tile_b
    if Bp != B:
        x = jnp.pad(x, ((0, Bp - B), (0, 0)))

    # Layer-3 weight as a (1, 64) row for the broadcast-multiply formulation.
    w3_row = jnp.reshape(w3, (1, -1))

    out2d = pl.pallas_call(
        mlp_kernel,
        out_shape=jax.ShapeDtypeStruct((num_tiles, tile_b), jnp.float32),
        grid=(num_tiles,),
        in_specs=[
            pl.BlockSpec((tile_b, F), lambda i: (i, 0)),        # x: streamed per tile
            pl.BlockSpec(w1.shape, lambda i: (0, 0)),           # weights: VMEM-resident
            pl.BlockSpec(b1.shape, lambda i: (0, 0)),
            pl.BlockSpec(w2.shape, lambda i: (0, 0)),
            pl.BlockSpec(b2.shape, lambda i: (0, 0)),
            pl.BlockSpec(w3_row.shape, lambda i: (0, 0)),
            pl.BlockSpec(b3.shape, lambda i: (0, 0)),
        ],
        out_specs=pl.BlockSpec((1, tile_b), lambda i: (i, 0)),  # lane-dense output slab
        compiler_params=pltpu.CompilerParams(
            dimension_semantics=("parallel",),
        ),
    )(x, w1, b1, w2, b2, w3_row, b3)

    return out2d.reshape(Bp, 1)[:B]


def init_linear_params(key, in_features, out_features):
    # Match PyTorch nn.Linear default init: U(-1/sqrt(fan_in), 1/sqrt(fan_in)).
    kw, kb = jax.random.split(key)
    bound = 1.0 / math.sqrt(in_features)
    # Stored already transposed: (in_features, out_features).
    w = jax.random.uniform(kw, (in_features, out_features), jnp.float32, -bound, bound)
    b = jax.random.uniform(kb, (1, out_features), jnp.float32, -bound, bound)
    return w, b


def reference_forward(x, w1, b1, w2, b2, w3, b3):
    h = jax.nn.sigmoid(x @ w1 + b1)
    h = jax.nn.sigmoid(h @ w2 + b2)
    return jax.nn.sigmoid(h @ w3 + b3)


if __name__ == "__main__":
    key = jax.random.PRNGKey(0)
    kx, k1, k2, k3 = jax.random.split(key, 4)

    B = 200  # small demo batch; exercises the padding + tiling path
    x = jax.random.normal(kx, (B, 14), jnp.float32)

    w1, b1 = init_linear_params(k1, 14, 128)
    w2, b2 = init_linear_params(k2, 128, 64)
    w3, b3 = init_linear_params(k3, 64, 1)

    out = mlp_forward(x, w1, b1, w2, b2, w3, b3)
    out = jax.block_until_ready(out)

    ref = reference_forward(x, w1, b1, w2, b2, w3, b3)
    assert out.shape == (B, 1), out.shape
    assert jnp.allclose(out, ref, atol=1e-5, rtol=1e-5), "mismatch vs reference"

    print("KERNEL_OK")
</pallas_src>

<mosaic_0001>
module attributes {stable_mosaic.version = 11 : i64} {
  func.func @mlp_kernel(%arg0: i32, %arg1: memref<256x14xf32, #tpu.memory_space<vmem>>, %arg2: memref<14x128xf32, #tpu.memory_space<vmem>>, %arg3: memref<1x128xf32, #tpu.memory_space<vmem>>, %arg4: memref<128x64xf32, #tpu.memory_space<vmem>>, %arg5: memref<1x64xf32, #tpu.memory_space<vmem>>, %arg6: memref<1x64xf32, #tpu.memory_space<vmem>>, %arg7: memref<1x1xf32, #tpu.memory_space<vmem>>, %arg8: memref<1x256xf32, #tpu.memory_space<vmem>>) attributes {dimension_semantics = [#tpu.dimension_semantics<parallel>], iteration_bounds = array<i64: 1>, scalar_prefetch = 0 : i64, scratch_operands = 0 : i64, tpu.core_type = #tpu.core_type<tc>, window_params = [{transform_indices = @transform_0, window_bounds = array<i64: 256, 14>}, {pipeline_mode = #tpu.pipeline_mode<synchronous>, transform_indices = @transform_1, window_bounds = array<i64: 14, 128>}, {pipeline_mode = #tpu.pipeline_mode<synchronous>, transform_indices = @transform_2, window_bounds = array<i64: 1, 128>}, {pipeline_mode = #tpu.pipeline_mode<synchronous>, transform_indices = @transform_3, window_bounds = array<i64: 128, 64>}, {pipeline_mode = #tpu.pipeline_mode<synchronous>, transform_indices = @transform_4, window_bounds = array<i64: 1, 64>}, {pipeline_mode = #tpu.pipeline_mode<synchronous>, transform_indices = @transform_5, window_bounds = array<i64: 1, 64>}, {pipeline_mode = #tpu.pipeline_mode<synchronous>, transform_indices = @transform_6, window_bounds = array<i64: 1, 1>}, {transform_indices = @transform_7, window_bounds = array<i64: 1, 256>}]} {
    %c0 = arith.constant 0 : index
    %c0_0 = arith.constant 0 : index
    %0 = vector.load %arg1[%c0, %c0_0] : memref<256x14xf32, #tpu.memory_space<vmem>>, vector<256x14xf32>
    %c0_1 = arith.constant 0 : index
    %c0_2 = arith.constant 0 : index
    %1 = vector.load %arg2[%c0_1, %c0_2] : memref<14x128xf32, #tpu.memory_space<vmem>>, vector<14x128xf32>
    %cst = arith.constant dense<0.000000e+00> : vector<256x128xf32>
    %2 = tpu.matmul %0, %1, %cst {dimension_numbers = #tpu.dot_dimension_numbers<[1], [0], [0], [1], [0, 0, 1, 1], [], []>} : vector<256x14xf32>, vector<14x128xf32>, vector<256x128xf32> -> vector<256x128xf32>
    %c0_3 = arith.constant 0 : index
    %c0_4 = arith.constant 0 : index
    %3 = vector.load %arg3[%c0_3, %c0_4] : memref<1x128xf32, #tpu.memory_space<vmem>>, vector<1x128xf32>
    %4 = vector.broadcast %3 : vector<1x128xf32> to vector<256x128xf32>
    %5 = arith.addf %2, %4 : vector<256x128xf32>
    %6 = arith.negf %5 : vector<256x128xf32>
    %7 = math.exp %6 : vector<256x128xf32>
    %cst_5 = arith.constant 1.000000e+00 : f32
    %8 = vector.broadcast %cst_5 : f32 to vector<256x128xf32>
    %9 = arith.addf %8, %7 : vector<256x128xf32>
    %10 = arith.divf %8, %9 : vector<256x128xf32>
    %c0_6 = arith.constant 0 : index
    %c0_7 = arith.constant 0 : index
    %11 = vector.load %arg4[%c0_6, %c0_7] : memref<128x64xf32, #tpu.memory_space<vmem>>, vector<128x64xf32>
    %cst_8 = arith.constant dense<0.000000e+00> : vector<256x64xf32>
    %12 = tpu.matmul %10, %11, %cst_8 {dimension_numbers = #tpu.dot_dimension_numbers<[1], [0], [0], [1], [0, 0, 1, 1], [], []>} : vector<256x128xf32>, vector<128x64xf32>, vector<256x64xf32> -> vector<256x64xf32>
    %c0_9 = arith.constant 0 : index
    %c0_10 = arith.constant 0 : index
    %13 = vector.load %arg5[%c0_9, %c0_10] : memref<1x64xf32, #tpu.memory_space<vmem>>, vector<1x64xf32>
    %14 = vector.broadcast %13 : vector<1x64xf32> to vector<256x64xf32>
    %15 = arith.addf %12, %14 : vector<256x64xf32>
    %16 = arith.negf %15 : vector<256x64xf32>
    %17 = math.exp %16 : vector<256x64xf32>
    %cst_11 = arith.constant 1.000000e+00 : f32
    %18 = vector.broadcast %cst_11 : f32 to vector<256x64xf32>
    %19 = arith.addf %18, %17 : vector<256x64xf32>
    %20 = arith.divf %18, %19 : vector<256x64xf32>
    %c0_12 = arith.constant 0 : index
    %c0_13 = arith.constant 0 : index
    %21 = vector.load %arg6[%c0_12, %c0_13] : memref<1x64xf32, #tpu.memory_space<vmem>>, vector<1x64xf32>
    %22 = vector.broadcast %21 : vector<1x64xf32> to vector<256x64xf32>
    %23 = arith.mulf %20, %22 : vector<256x64xf32>
    %cst_14 = arith.constant dense<0.000000e+00> : vector<256xf32>
    %24 = vector.multi_reduction <add>, %23, %cst_14 [1] : vector<256x64xf32> to vector<256xf32>
    %25 = vector.shape_cast %24 : vector<256xf32> to vector<1x256xf32>
    %c0_15 = arith.constant 0 : index
    %c0_16 = arith.constant 0 : index
    %26 = vector.load %arg7[%c0_15, %c0_16] : memref<1x1xf32, #tpu.memory_space<vmem>>, vector<1x1xf32>
    %27 = vector.broadcast %26 : vector<1x1xf32> to vector<1x256xf32>
    %28 = arith.addf %25, %27 : vector<1x256xf32>
    %29 = arith.negf %28 : vector<1x256xf32>
    %30 = math.exp %29 : vector<1x256xf32>
    %cst_17 = arith.constant 1.000000e+00 : f32
    %31 = vector.broadcast %cst_17 : f32 to vector<1x256xf32>
    %32 = arith.addf %31, %30 : vector<1x256xf32>
    %33 = arith.divf %31, %32 : vector<1x256xf32>
    %c0_18 = arith.constant 0 : index
    %c0_19 = arith.constant 0 : index
    %34 = vector.load %arg8[%c0_18, %c0_19] : memref<1x256xf32, #tpu.memory_space<vmem>>, vector<1x256xf32>
    tpu.vector_store %arg8[%c0_18, %c0_19], %33 {strides = array<i32>} : memref<1x256xf32, #tpu.memory_space<vmem>>, vector<1x256xf32>,
    return
  }
  func.func @transform_0(%arg0: i32) -> (i32, i32) {
    %c0_i32 = arith.constant 0 : i32
    %c0_i32_0 = arith.constant 0 : i32
    return %arg0, %c0_i32 : i32, i32
  }
  func.func @transform_1(%arg0: i32) -> (i32, i32) {
    %c0_i32 = arith.constant 0 : i32
    %c0_i32_0 = arith.constant 0 : i32
    %c0_i32_1 = arith.constant 0 : i32
    return %c0_i32, %c0_i32_0 : i32, i32
  }
  func.func @transform_2(%arg0: i32) -> (i32, i32) {
    %c0_i32 = arith.constant 0 : i32
    %c0_i32_0 = arith.constant 0 : i32
    %c0_i32_1 = arith.constant 0 : i32
    return %c0_i32, %c0_i32_0 : i32, i32
  }
  func.func @transform_3(%arg0: i32) -> (i32, i32) {
    %c0_i32 = arith.constant 0 : i32
    %c0_i32_0 = arith.constant 0 : i32
    %c0_i32_1 = arith.constant 0 : i32
    return %c0_i32, %c0_i32_0 : i32, i32
  }
  func.func @transform_4(%arg0: i32) -> (i32, i32) {
    %c0_i32 = arith.constant 0 : i32
    %c0_i32_0 = arith.constant 0 : i32
    %c0_i32_1 = arith.constant 0 : i32
    return %c0_i32, %c0_i32_0 : i32, i32
  }
  func.func @transform_5(%arg0: i32) -> (i32, i32) {
    %c0_i32 = arith.constant 0 : i32
    %c0_i32_0 = arith.constant 0 : i32
    %c0_i32_1 = arith.constant 0 : i32
    return %c0_i32, %c0_i32_0 : i32, i32
  }
  func.func @transform_6(%arg0: i32) -> (i32, i32) {
    %c0_i32 = arith.constant 0 : i32
    %c0_i32_0 = arith.constant 0 : i32
    %c0_i32_1 = arith.constant 0 : i32
    return %c0_i32, %c0_i32_0 : i32, i32
  }
  func.func @transform_7(%arg0: i32) -> (i32, i32) {
    %c0_i32 = arith.constant 0 : i32
    %c0_i32_0 = arith.constant 0 : i32
    return %arg0, %c0_i32 : i32, i32
  }
}

</mosaic_0001>

<llo_original>
// kernel: tpu_custom_call.1
$region0: #{tpu_custom_call.1}
  #allocation0 [shape = 'u32[]', space=smem, size = 0x4, offset = 0x4, fixed_abs, tag = 'smem constant byte address 0x4 - core index']
  #allocation1 [shape = 'u32[72,128]{1,0:T(1,128)}', space=vmem, size = 0x9000, scoped, tag = 'internal scratch']
  #allocation2 [shape = 'f32[1,1]{1,0:T(1,128)S(1)}', space=vmem, size = 0x200, scoped, tag = 'scoped memory for tpu_custom_call.1']
  %s0 = inlined_call_operand.vmem [shape: f32[256,14], index: 0, kind: input, shape index: {}]
  %s1 = inlined_call_operand.vmem [shape: f32[14,128], index: 1, kind: input, shape index: {}]
  %s2 = inlined_call_operand.vmem [shape: f32[1,128], index: 2, kind: input, shape index: {}]
  %s3 = inlined_call_operand.vmem [shape: f32[128,64], index: 3, kind: input, shape index: {}]
  %s4 = inlined_call_operand.vmem [shape: f32[1,64], index: 4, kind: input, shape index: {}]
  %s5 = inlined_call_operand.vmem [shape: f32[1,64], index: 5, kind: input, shape index: {}]
  %s6 = inlined_call_operand.<no memory space> [shape: f32[1,1], index: 6, kind: input, shape index: {}]
  %s7 = inlined_call_operand.hbm [shape: f32[1,256], index: 7, kind: output, shape index: {}]
  %s8 = sld [smem:[#allocation0]]
  $region38: #{tpu_custom_call.1} parent=0
    _
  %s10 = ssub.s32 1, %s8
  %s11 = scalar_select 0, %s10, %s8
  %v12 = vstv %s6
  %13 = vst [vmem:[#allocation2] sm:$0x1] %v12
  $region1: #{tpu_custom_call.1} parent=0
    #allocation3 [shape = 'u8[1024]{0}', space=vmem, size = 0x400, scoped, tag = 'output window, operand 0, single buffered']
    #allocation4 [shape = 's32[1]{0}', space=sflag, size = 0x4, scoped, tag = 'scoped memory for tpu_custom_call.1']
    %14 = vsyncpa [#allocation4], 0
    // Predicated region
    $region2: #{tpu_custom_call.1} parent=1 // pred_check
      _
    $region3: #{tpu_custom_call.1} parent=1 // pred_check_branch
      %16 = sbr.rel (0) target = $region5
    $region4: #{tpu_custom_call.1} parent=1 // pred_region
      _
    $region5: #{tpu_custom_call.1} parent=1 // pred_fallthru
      _
    // Predicated region
    $region6: #{tpu_custom_call.1} parent=1 // pred_check
      _
    $region7: #{tpu_custom_call.1} parent=1 // pred_check_branch
      %18 = sbr.rel (0) target = $region9
    $region8: #{tpu_custom_call.1} parent=1 // pred_region
      _
    $region9: #{tpu_custom_call.1} parent=1 // pred_fallthru
      _
    // Predicated region
    $region10: #{tpu_custom_call.1} parent=1 // pred_check
      _
    $region11: #{tpu_custom_call.1} parent=1 // pred_check_branch
      %20 = sbr.rel (0) target = $region13
    $region12: #{tpu_custom_call.1} parent=1 // pred_region
      _
    $region13: #{tpu_custom_call.1} parent=1 // pred_fallthru
      _
    // Predicated region
    $region14: #{tpu_custom_call.1} parent=1 // pred_check
      _
    $region15: #{tpu_custom_call.1} parent=1 // pred_check_branch
      %22 = sbr.rel (0) target = $region17
    $region16: #{tpu_custom_call.1} parent=1 // pred_region
      _
    $region17: #{tpu_custom_call.1} parent=1 // pred_fallthru
      _
    // Predicated region
    $region18: #{tpu_custom_call.1} parent=1 // pred_check
      _
    $region19: #{tpu_custom_call.1} parent=1 // pred_check_branch
      %24 = sbr.rel (0) target = $region21
    $region20: #{tpu_custom_call.1} parent=1 // pred_region
      _
    $region21: #{tpu_custom_call.1} parent=1 // pred_fallthru
      _
    // Predicated region
    $region22: #{tpu_custom_call.1} parent=1 // pred_check
      _
    $region23: #{tpu_custom_call.1} parent=1 // pred_check_branch
      %26 = sbr.rel (0) target = $region25
    $region24: #{tpu_custom_call.1} parent=1 // pred_region
      _
    $region25: #{tpu_custom_call.1} parent=1 // pred_fallthru
      _
    // Predicated region
    $region26: #{tpu_custom_call.1} parent=1 // pred_check
      _
    $region27: #{tpu_custom_call.1} parent=1 // pred_check_branch
      %28 = sbr.rel (0) target = $region29
    $region28: #{tpu_custom_call.1} parent=1 // pred_region
      _
    $region29: #{tpu_custom_call.1} parent=1 // pred_fallthru
      _
    %v29 = vld [vmem:[%s0] sm:$0xff]
    %v30 = vld [vmem:[%s0 + $0x8] sm:$0xff]
    %v31 = vld [vmem:[%s0 + $0x10] sm:$0xff]
    %v32 = vld [vmem:[%s0 + $0x18] sm:$0xff]
    %v33 = vld [vmem:[%s0 + $0x20] sm:$0xff]
    %v34 = vld [vmem:[%s0 + $0x28] sm:$0xff]
    %v35 = vld [vmem:[%s0 + $0x30] sm:$0xff]
    %v36 = vld [vmem:[%s0 + $0x38] sm:$0xff]
    %v37 = vld [vmem:[%s0 + $0x40] sm:$0xff]
    %v38 = vld [vmem:[%s0 + $0x48] sm:$0xff]
    %v39 = vld [vmem:[%s0 + $0x50] sm:$0xff]
    %v40 = vld [vmem:[%s0 + $0x58] sm:$0xff]
    %v41 = vld [vmem:[%s0 + $0x60] sm:$0xff]
    %v42 = vld [vmem:[%s0 + $0x68] sm:$0xff]
    %v43 = vld [vmem:[%s0 + $0x70] sm:$0xff]
    %v44 = vld [vmem:[%s0 + $0x78] sm:$0xff]
    %v45 = vld [vmem:[%s0 + $0x80] sm:$0xff]
    %v46 = vld [vmem:[%s0 + $0x88] sm:$0xff]
    %v47 = vld [vmem:[%s0 + $0x90] sm:$0xff]
    %v48 = vld [vmem:[%s0 + $0x98] sm:$0xff]
    %v49 = vld [vmem:[%s0 + $0xa0] sm:$0xff]
    %v50 = vld [vmem:[%s0 + $0xa8] sm:$0xff]
    %v51 = vld [vmem:[%s0 + $0xb0] sm:$0xff]
    %v52 = vld [vmem:[%s0 + $0xb8] sm:$0xff]
    %v53 = vld [vmem:[%s0 + $0xc0] sm:$0xff]
    %v54 = vld [vmem:[%s0 + $0xc8] sm:$0xff]
    %v55 = vld [vmem:[%s0 + $0xd0] sm:$0xff]
    %v56 = vld [vmem:[%s0 + $0xd8] sm:$0xff]
    %v57 = vld [vmem:[%s0 + $0xe0] sm:$0xff]
    %v58 = vld [vmem:[%s0 + $0xe8] sm:$0xff]
    %v59 = vld [vmem:[%s0 + $0xf0] sm:$0xff]
    %v60 = vld [vmem:[%s0 + $0xf8] sm:$0xff]
    %v61 = vld [vmem:[%s1] sm:$0xff]
    %v62 = vld [vmem:[%s1 + $0x8] sm:$0x3f]
    %v63 = vld [vmem:[%s2] sm:$0x1]
    %v65 = vperm.slane %v63, 0
    %vm67 = vcmask 113664
    %v69 = vsel %vm67, %v29, 0
    %v72 = vsel %vm67, %v30, 0
    %v75 = vsel %vm67, %v31, 0
    %v78 = vsel %vm67, %v32, 0
    %v81 = vsel %vm67, %v33, 0
    %v84 = vsel %vm67, %v34, 0
    %v87 = vsel %vm67, %v35, 0
    %v90 = vsel %vm67, %v36, 0
    %v93 = vsel %vm67, %v37, 0
    %v96 = vsel %vm67, %v38, 0
    %v99 = vsel %vm67, %v39, 0
    %v102 = vsel %vm67, %v40, 0
    %v105 = vsel %vm67, %v41, 0
    %v108 = vsel %vm67, %v42, 0
    %v111 = vsel %vm67, %v43, 0
    %v114 = vsel %vm67, %v44, 0
    %v117 = vsel %vm67, %v45, 0
    %v120 = vsel %vm67, %v46, 0
    %v123 = vsel %vm67, %v47, 0
    %v126 = vsel %vm67, %v48, 0
    %v129 = vsel %vm67, %v49, 0
    %v132 = vsel %vm67, %v50, 0
    %v135 = vsel %vm67, %v51, 0
    %v138 = vsel %vm67, %v52, 0
    %v141 = vsel %vm67, %v53, 0
    %v144 = vsel %vm67, %v54, 0
    %v147 = vsel %vm67, %v55, 0
    %v150 = vsel %vm67, %v56, 0
    %v153 = vsel %vm67, %v57, 0
    %v156 = vsel %vm67, %v58, 0
    %v159 = vsel %vm67, %v59, 0
    %v162 = vsel %vm67, %v60, 0
    %vm164 = vcmask 1045504
    %v166 = vsel %vm164, %v62, 0
    %168 = vmatpush.msra.mxu0 0.0
    %169 = vmatpush.msra.mxu0 0.0
    %170 = vmatpush.msra.mxu0 0.0
    %171 = vmatpush.msra.mxu0 0.0
    %172 = vmatpush.msra.mxu0 0.0
    %173 = vmatpush.msra.mxu0 0.0
    %174 = vmatpush.msra.mxu0 0.0
    %175 = vmatpush.msra.mxu0 0.0
    %176 = vmatpush.msra.mxu0 0.0
    %177 = vmatpush.msra.mxu0 0.0
    %178 = vmatpush.msra.mxu0 0.0
    %179 = vmatpush.msra.mxu0 0.0
    %180 = vmatpush.msra.mxu0 0.0
    %181 = vmatpush.msra.mxu0 0.0
    %182 = vmatpush.msra.mxu0 %v166
    %183 = vmatpush.msra.mxu0 %v61
    %184 = vmatmul.f32.gmra.mxu0 %v69
    %v185 = vpop.f32.mrf.mxu0
    %v186 = vadd.f32 %v65, %v185
    %187 = vmatmul.f32.gmra.mxu0 %v72
    %v188 = vpop.f32.mrf.mxu0
    %v189 = vadd.f32 %v65, %v188
    %190 = vmatmul.f32.gmra.mxu0 %v75
    %v191 = vpop.f32.mrf.mxu0
    %v192 = vadd.f32 %v65, %v191
    %193 = vmatmul.f32.gmra.mxu0 %v78
    %v194 = vpop.f32.mrf.mxu0
    %v195 = vadd.f32 %v65, %v194
    %196 = vmatmul.f32.gmra.mxu0 %v81
    %v197 = vpop.f32.mrf.mxu0
    %v198 = vadd.f32 %v65, %v197
    %199 = vmatmul.f32.gmra.mxu0 %v84
    %v200 = vpop.f32.mrf.mxu0
    %v201 = vadd.f32 %v65, %v200
    %202 = vmatmul.f32.gmra.mxu0 %v87
    %v203 = vpop.f32.mrf.mxu0
    %v204 = vadd.f32 %v65, %v203
    %205 = vmatmul.f32.gmra.mxu0 %v90
    %v206 = vpop.f32.mrf.mxu0
    %v207 = vadd.f32 %v65, %v206
    %208 = vmatmul.f32.gmra.mxu0 %v93
    %v209 = vpop.f32.mrf.mxu0
    %v210 = vadd.f32 %v65, %v209
    %211 = vmatmul.f32.gmra.mxu0 %v96
    %v212 = vpop.f32.mrf.mxu0
    %v213 = vadd.f32 %v65, %v212
    %214 = vmatmul.f32.gmra.mxu0 %v99
    %v215 = vpop.f32.mrf.mxu0
    %v216 = vadd.f32 %v65, %v215
    %217 = vmatmul.f32.gmra.mxu0 %v102
    %v218 = vpop.f32.mrf.mxu0
    %v219 = vadd.f32 %v65, %v218
    %220 = vmatmul.f32.gmra.mxu0 %v105
    %v221 = vpop.f32.mrf.mxu0
    %v222 = vadd.f32 %v65, %v221
    %223 = vmatmul.f32.gmra.mxu0 %v108
    %v224 = vpop.f32.mrf.mxu0
    %v225 = vadd.f32 %v65, %v224
    %226 = vmatmul.f32.gmra.mxu0 %v111
    %v227 = vpop.f32.mrf.mxu0
    %v228 = vadd.f32 %v65, %v227
    %229 = vmatmul.f32.gmra.mxu0 %v114
    %v230 = vpop.f32.mrf.mxu0
    %v231 = vadd.f32 %v65, %v230
    %232 = vmatmul.f32.gmra.mxu0 %v117
    %v233 = vpop.f32.mrf.mxu0
    %v234 = vadd.f32 %v65, %v233
    %235 = vmatmul.f32.gmra.mxu0 %v120
    %v236 = vpop.f32.mrf.mxu0
    %v237 = vadd.f32 %v65, %v236
    %238 = vmatmul.f32.gmra.mxu0 %v123
    %v239 = vpop.f32.mrf.mxu0
    %v240 = vadd.f32 %v65, %v239
    %241 = vmatmul.f32.gmra.mxu0 %v126
    %v242 = vpop.f32.mrf.mxu0
    %v243 = vadd.f32 %v65, %v242
    %244 = vmatmul.f32.gmra.mxu0 %v129
    %v245 = vpop.f32.mrf.mxu0
    %v246 = vadd.f32 %v65, %v245
    %247 = vmatmul.f32.gmra.mxu0 %v132
    %v248 = vpop.f32.mrf.mxu0
    %v249 = vadd.f32 %v65, %v248
    %250 = vmatmul.f32.gmra.mxu0 %v135
    %v251 = vpop.f32.mrf.mxu0
    %v252 = vadd.f32 %v65, %v251
    %253 = vmatmul.f32.gmra.mxu0 %v138
    %v254 = vpop.f32.mrf.mxu0
    %v255 = vadd.f32 %v65, %v254
    %256 = vmatmul.f32.gmra.mxu0 %v141
    %v257 = vpop.f32.mrf.mxu0
    %v258 = vadd.f32 %v65, %v257
    %259 = vmatmul.f32.gmra.mxu0 %v144
    %v260 = vpop.f32.mrf.mxu0
    %v261 = vadd.f32 %v65, %v260
    %262 = vmatmul.f32.gmra.mxu0 %v147
    %v263 = vpop.f32.mrf.mxu0
    %v264 = vadd.f32 %v65, %v263
    %265 = vmatmul.f32.gmra.mxu0 %v150
    %v266 = vpop.f32.mrf.mxu0
    %v267 = vadd.f32 %v65, %v266
    %268 = vmatmul.f32.gmra.mxu0 %v153
    %v269 = vpop.f32.mrf.mxu0
    %v270 = vadd.f32 %v65, %v269
    %271 = vmatmul.f32.gmra.mxu0 %v156
    %v272 = vpop.f32.mrf.mxu0
    %v273 = vadd.f32 %v65, %v272
    %274 = vmatmul.f32.gmra.mxu0 %v159
    %v275 = vpop.f32.mrf.mxu0
    %v276 = vadd.f32 %v65, %v275
    %277 = vmatmul.f32.gmra.mxu0 %v162
    %v278 = vpop.f32.mrf.mxu0
    %v279 = vadd.f32 %v65, %v278
    %280 = vdwg.mxu0
    %v281 = vxor.u32 %v186, 2147483648
    %v282 = vxor.u32 %v189, 2147483648
    %v283 = vxor.u32 %v192, 2147483648
    %v284 = vxor.u32 %v195, 2147483648
    %v285 = vxor.u32 %v198, 2147483648
    %v286 = vxor.u32 %v201, 2147483648
    %v287 = vxor.u32 %v204, 2147483648
    %v288 = vxor.u32 %v207, 2147483648
    %v289 = vxor.u32 %v210, 2147483648
    %v290 = vxor.u32 %v213, 2147483648
    %v291 = vxor.u32 %v216, 2147483648
    %v292 = vxor.u32 %v219, 2147483648
    %v293 = vxor.u32 %v222, 2147483648
    %v294 = vxor.u32 %v225, 2147483648
    %v295 = vxor.u32 %v228, 2147483648
    %v296 = vxor.u32 %v231, 2147483648
    %v297 = vxor.u32 %v234, 2147483648
    %v298 = vxor.u32 %v237, 2147483648
    %v299 = vxor.u32 %v240, 2147483648
    %v300 = vxor.u32 %v243, 2147483648
    %v301 = vxor.u32 %v246, 2147483648
    %v302 = vxor.u32 %v249, 2147483648
    %v303 = vxor.u32 %v252, 2147483648
    %v304 = vxor.u32 %v255, 2147483648
    %v305 = vxor.u32 %v258, 2147483648
    %v306 = vxor.u32 %v261, 2147483648
    %v307 = vxor.u32 %v264, 2147483648
    %v308 = vxor.u32 %v267, 2147483648
    %v309 = vxor.u32 %v270, 2147483648
    %v310 = vxor.u32 %v273, 2147483648
    %v311 = vxor.u32 %v276, 2147483648
    %v312 = vxor.u32 %v279, 2147483648
    %v313 = vmul.f32 %v281, 1.442695
    %v314 = vpow.pop %v313
    %v315 = vmul.f32 %v282, 1.442695
    %v316 = vpow.pop %v315
    %v317 = vmul.f32 %v283, 1.442695
    %v318 = vpow.pop %v317
    %v319 = vmul.f32 %v284, 1.442695
    %v320 = vpow.pop %v319
    %v321 = vmul.f32 %v285, 1.442695
    %v322 = vpow.pop %v321
    %v323 = vmul.f32 %v286, 1.442695
    %v324 = vpow.pop %v323
    %v325 = vmul.f32 %v287, 1.442695
    %v326 = vpow.pop %v325
    %v327 = vmul.f32 %v288, 1.442695
    %v328 = vpow.pop %v327
    %v329 = vmul.f32 %v289, 1.442695
    %v330 = vpow.pop %v329
    %v331 = vmul.f32 %v290, 1.442695
    %v332 = vpow.pop %v331
    %v333 = vmul.f32 %v291, 1.442695
    %v334 = vpow.pop %v333
    %v335 = vmul.f32 %v292, 1.442695
    %v336 = vpow.pop %v335
    %v337 = vmul.f32 %v293, 1.442695
    %v338 = vpow.pop %v337
    %v339 = vmul.f32 %v294, 1.442695
    %v340 = vpow.pop %v339
    %v341 = vmul.f32 %v295, 1.442695
    %v342 = vpow.pop %v341
    %v343 = vmul.f32 %v296, 1.442695
    %v344 = vpow.pop %v343
    %v345 = vmul.f32 %v297, 1.442695
    %v346 = vpow.pop %v345
    %v347 = vmul.f32 %v298, 1.442695
    %v348 = vpow.pop %v347
    %v349 = vmul.f32 %v299, 1.442695
    %v350 = vpow.pop %v349
    %v351 = vmul.f32 %v300, 1.442695
    %v352 = vpow.pop %v351
    %v353 = vmul.f32 %v301, 1.442695
    %v354 = vpow.pop %v353
    %v355 = vmul.f32 %v302, 1.442695
    %v356 = vpow.pop %v355
    %v357 = vmul.f32 %v303, 1.442695
    %v358 = vpow.pop %v357
    %v359 = vmul.f32 %v304, 1.442695
    %v360 = vpow.pop %v359
    %v361 = vmul.f32 %v305, 1.442695
    %v362 = vpow.pop %v361
    %v363 = vmul.f32 %v306, 1.442695
    %v364 = vpow.pop %v363
    %v365 = vmul.f32 %v307, 1.442695
    %v366 = vpow.pop %v365
    %v367 = vmul.f32 %v308, 1.442695
    %v368 = vpow.pop %v367
    %v369 = vmul.f32 %v309, 1.442695
    %v370 = vpow.pop %v369
    %v371 = vmul.f32 %v310, 1.442695
    %v372 = vpow.pop %v371
    %v373 = vmul.f32 %v311, 1.442695
    %v374 = vpow.pop %v373
    %v375 = vmul.f32 %v312, 1.442695
    %v376 = vpow.pop %v375
    %v377 = vadd.f32 %v314, 1.0
    %v378 = vadd.f32 %v316, 1.0
    %v379 = vadd.f32 %v318, 1.0
    %v380 = vadd.f32 %v320, 1.0
    %v381 = vadd.f32 %v322, 1.0
    %v382 = vadd.f32 %v324, 1.0
    %v383 = vadd.f32 %v326, 1.0
    %v384 = vadd.f32 %v328, 1.0
    %v385 = vadd.f32 %v330, 1.0
    %v386 = vadd.f32 %v332, 1.0
    %v387 = vadd.f32 %v334, 1.0
    %v388 = vadd.f32 %v336, 1.0
    %v389 = vadd.f32 %v338, 1.0
    %v390 = vadd.f32 %v340, 1.0
    %v391 = vadd.f32 %v342, 1.0
    %v392 = vadd.f32 %v344, 1.0
    %v393 = vadd.f32 %v346, 1.0
    %v394 = vadd.f32 %v348, 1.0
    %v395 = vadd.f32 %v350, 1.0
    %v396 = vadd.f32 %v352, 1.0
    %v397 = vadd.f32 %v354, 1.0
    %v398 = vadd.f32 %v356, 1.0
    %v399 = vadd.f32 %v358, 1.0
    %v400 = vadd.f32 %v360, 1.0
    %v401 = vadd.f32 %v362, 1.0
    %v402 = vadd.f32 %v364, 1.0
    %v403 = vadd.f32 %v366, 1.0
    %v404 = vadd.f32 %v368, 1.0
    %v405 = vadd.f32 %v370, 1.0
    %v406 = vadd.f32 %v372, 1.0
    %v407 = vadd.f32 %v374, 1.0
    %v408 = vadd.f32 %v376, 1.0
    %v409 = vrcp.pop %v377
    %v410 = vmul.f32 %v377, %v409
    %v411 = vsub.f32 1.0, %v410
    %v412 = vmul.f32 %v409, %v411
    %v413 = vadd.f32 %v409, %v412
    %vm414 = vweird.f32 %v377
    %vm415 = vweird.f32 %v409
    %vm416 = vmor %vm414, %vm415
    %v417 = vsel %vm416, %v409, %v413
    %v418 = vand.u32 2147483647, %v377
    %vm419 = vcmp.eq.f32.partialorder %v418, 8.507059e+37
    %v420 = vand.u32 %v377, 2147483648
    %v421 = vor.u32 1.1754944e-38, %v420
    %v422 = vsel %vm419, %v421, %v417
    %v423 = vmul.f32 1.0, %v422
    %v424 = vrcp.pop %v378
    %v425 = vmul.f32 %v378, %v424
    %v426 = vsub.f32 1.0, %v425
    %v427 = vmul.f32 %v424, %v426
    %v428 = vadd.f32 %v424, %v427
    %vm429 = vweird.f32 %v378
    %vm430 = vweird.f32 %v424
    %vm431 = vmor %vm429, %vm430
    %v432 = vsel %vm431, %v424, %v428
    %v433 = vand.u32 2147483647, %v378
    %vm434 = vcmp.eq.f32.partialorder %v433, 8.507059e+37
    %v435 = vand.u32 %v378, 2147483648
    %v436 = vor.u32 1.1754944e-38, %v435
    %v437 = vsel %vm434, %v436, %v432
    %v438 = vmul.f32 1.0, %v437
    %v439 = vrcp.pop %v379
    %v440 = vmul.f32 %v379, %v439
    %v441 = vsub.f32 1.0, %v440
    %v442 = vmul.f32 %v439, %v441
    %v443 = vadd.f32 %v439, %v442
    %vm444 = vweird.f32 %v379
    %vm445 = vweird.f32 %v439
    %vm446 = vmor %vm444, %vm445
    %v447 = vsel %vm446, %v439, %v443
    %v448 = vand.u32 2147483647, %v379
    %vm449 = vcmp.eq.f32.partialorder %v448, 8.507059e+37
    %v450 = vand.u32 %v379, 2147483648
    %v451 = vor.u32 1.1754944e-38, %v450
    %v452 = vsel %vm449, %v451, %v447
    %v453 = vmul.f32 1.0, %v452
    %v454 = vrcp.pop %v380
    %v455 = vmul.f32 %v380, %v454
    %v456 = vsub.f32 1.0, %v455
    %v457 = vmul.f32 %v454, %v456
    %v458 = vadd.f32 %v454, %v457
    %vm459 = vweird.f32 %v380
    %vm460 = vweird.f32 %v454
    %vm461 = vmor %vm459, %vm460
    %v462 = vsel %vm461, %v454, %v458
    %v463 = vand.u32 2147483647, %v380
    %vm464 = vcmp.eq.f32.partialorder %v463, 8.507059e+37
    %v465 = vand.u32 %v380, 2147483648
    %v466 = vor.u32 1.1754944e-38, %v465
    %v467 = vsel %vm464, %v466, %v462
    %v468 = vmul.f32 1.0, %v467
    %v469 = vrcp.pop %v381
    %v470 = vmul.f32 %v381, %v469
    %v471 = vsub.f32 1.0, %v470
    %v472 = vmul.f32 %v469, %v471
    %v473 = vadd.f32 %v469, %v472
    %vm474 = vweird.f32 %v381
    %vm475 = vweird.f32 %v469
    %vm476 = vmor %vm474, %vm475
    %v477 = vsel %vm476, %v469, %v473
    %v478 = vand.u32 2147483647, %v381
    %vm479 = vcmp.eq.f32.partialorder %v478, 8.507059e+37
    %v480 = vand.u32 %v381, 2147483648
    %v481 = vor.u32 1.1754944e-38, %v480
    %v482 = vsel %vm479, %v481, %v477
    %v483 = vmul.f32 1.0, %v482
    %v484 = vrcp.pop %v382
    %v485 = vmul.f32 %v382, %v484
    %v486 = vsub.f32 1.0, %v485
    %v487 = vmul.f32 %v484, %v486
    %v488 = vadd.f32 %v484, %v487
    %vm489 = vweird.f32 %v382
    %vm490 = vweird.f32 %v484
    %vm491 = vmor %vm489, %vm490
    %v492 = vsel %vm491, %v484, %v488
    %v493 = vand.u32 2147483647, %v382
    %vm494 = vcmp.eq.f32.partialorder %v493, 8.507059e+37
    %v495 = vand.u32 %v382, 2147483648
    %v496 = vor.u32 1.1754944e-38, %v495
    %v497 = vsel %vm494, %v496, %v492
    %v498 = vmul.f32 1.0, %v497
    %v499 = vrcp.pop %v383
    %v500 = vmul.f32 %v383, %v499
    %v501 = vsub.f32 1.0, %v500
    %v502 = vmul.f32 %v499, %v501
    %v503 = vadd.f32 %v499, %v502
    %vm504 = vweird.f32 %v383
    %vm505 = vweird.f32 %v499
    %vm506 = vmor %vm504, %vm505
    %v507 = vsel %vm506, %v499, %v503
    %v508 = vand.u32 2147483647, %v383
    %vm509 = vcmp.eq.f32.partialorder %v508, 8.507059e+37
    %v510 = vand.u32 %v383, 2147483648
    %v511 = vor.u32 1.1754944e-38, %v510
    %v512 = vsel %vm509, %v511, %v507
    %v513 = vmul.f32 1.0, %v512
    %v514 = vrcp.pop %v384
    %v515 = vmul.f32 %v384, %v514
    %v516 = vsub.f32 1.0, %v515
    %v517 = vmul.f32 %v514, %v516
    %v518 = vadd.f32 %v514, %v517
    %vm519 = vweird.f32 %v384
    %vm520 = vweird.f32 %v514
    %vm521 = vmor %vm519, %vm520
    %v522 = vsel %vm521, %v514, %v518
    %v523 = vand.u32 2147483647, %v384
    %vm524 = vcmp.eq.f32.partialorder %v523, 8.507059e+37
    %v525 = vand.u32 %v384, 2147483648
    %v526 = vor.u32 1.1754944e-38, %v525
    %v527 = vsel %vm524, %v526, %v522
    %v528 = vmul.f32 1.0, %v527
    %v529 = vrcp.pop %v385
    %v530 = vmul.f32 %v385, %v529
    %v531 = vsub.f32 1.0, %v530
    %v532 = vmul.f32 %v529, %v531
    %v533 = vadd.f32 %v529, %v532
    %vm534 = vweird.f32 %v385
    %vm535 = vweird.f32 %v529
    %vm536 = vmor %vm534, %vm535
    %v537 = vsel %vm536, %v529, %v533
    %v538 = vand.u32 2147483647, %v385
    %vm539 = vcmp.eq.f32.partialorder %v538, 8.507059e+37
    %v540 = vand.u32 %v385, 2147483648
    %v541 = vor.u32 1.1754944e-38, %v540
    %v542 = vsel %vm539, %v541, %v537
    %v543 = vmul.f32 1.0, %v542
    %v544 = vrcp.pop %v386
    %v545 = vmul.f32 %v386, %v544
    %v546 = vsub.f32 1.0, %v545
    %v547 = vmul.f32 %v544, %v546
    %v548 = vadd.f32 %v544, %v547
    %vm549 = vweird.f32 %v386
    %vm550 = vweird.f32 %v544
    %vm551 = vmor %vm549, %vm550
    %v552 = vsel %vm551, %v544, %v548
    %v553 = vand.u32 2147483647, %v386
    %vm554 = vcmp.eq.f32.partialorder %v553, 8.507059e+37
    %v555 = vand.u32 %v386, 2147483648
    %v556 = vor.u32 1.1754944e-38, %v555
    %v557 = vsel %vm554, %v556, %v552
    %v558 = vmul.f32 1.0, %v557
    %v559 = vrcp.pop %v387
    %v560 = vmul.f32 %v387, %v559
    %v561 = vsub.f32 1.0, %v560
    %v562 = vmul.f32 %v559, %v561
    %v563 = vadd.f32 %v559, %v562
    %vm564 = vweird.f32 %v387
    %vm565 = vweird.f32 %v559
    %vm566 = vmor %vm564, %vm565
    %v567 = vsel %vm566, %v559, %v563
    %v568 = vand.u32 2147483647, %v387
    %vm569 = vcmp.eq.f32.partialorder %v568, 8.507059e+37
    %v570 = vand.u32 %v387, 2147483648
    %v571 = vor.u32 1.1754944e-38, %v570
    %v572 = vsel %vm569, %v571, %v567
    %v573 = vmul.f32 1.0, %v572
    %v574 = vrcp.pop %v388
    %v575 = vmul.f32 %v388, %v574
    %v576 = vsub.f32 1.0, %v575
    %v577 = vmul.f32 %v574, %v576
    %v578 = vadd.f32 %v574, %v577
    %vm579 = vweird.f32 %v388
    %vm580 = vweird.f32 %v574
    %vm581 = vmor %vm579, %vm580
    %v582 = vsel %vm581, %v574, %v578
    %v583 = vand.u32 2147483647, %v388
    %vm584 = vcmp.eq.f32.partialorder %v583, 8.507059e+37
    %v585 = vand.u32 %v388, 2147483648
    %v586 = vor.u32 1.1754944e-38, %v585
    %v587 = vsel %vm584, %v586, %v582
    %v588 = vmul.f32 1.0, %v587
    %v589 = vrcp.pop %v389
    %v590 = vmul.f32 %v389, %v589
    %v591 = vsub.f32 1.0, %v590
    %v592 = vmul.f32 %v589, %v591
    %v593 = vadd.f32 %v589, %v592
    %vm594 = vweird.f32 %v389
    %vm595 = vweird.f32 %v589
    %vm596 = vmor %vm594, %vm595
    %v597 = vsel %vm596, %v589, %v593
    %v598 = vand.u32 2147483647, %v389
    %vm599 = vcmp.eq.f32.partialorder %v598, 8.507059e+37
    %v600 = vand.u32 %v389, 2147483648
    %v601 = vor.u32 1.1754944e-38, %v600
    %v602 = vsel %vm599, %v601, %v597
    %v603 = vmul.f32 1.0, %v602
    %v604 = vrcp.pop %v390
    %v605 = vmul.f32 %v390, %v604
    %v606 = vsub.f32 1.0, %v605
    %v607 = vmul.f32 %v604, %v606
    %v608 = vadd.f32 %v604, %v607
    %vm609 = vweird.f32 %v390
    %vm610 = vweird.f32 %v604
    %vm611 = vmor %vm609, %vm610
    %v612 = vsel %vm611, %v604, %v608
    %v613 = vand.u32 2147483647, %v390
    %vm614 = vcmp.eq.f32.partialorder %v613, 8.507059e+37
    %v615 = vand.u32 %v390, 2147483648
    %v616 = vor.u32 1.1754944e-38, %v615
    %v617 = vsel %vm614, %v616, %v612
    %v618 = vmul.f32 1.0, %v617
    %v619 = vrcp.pop %v391
    %v620 = vmul.f32 %v391, %v619
    %v621 = vsub.f32 1.0, %v620
    %v622 = vmul.f32 %v619, %v621
    %v623 = vadd.f32 %v619, %v622
    %vm624 = vweird.f32 %v391
    %vm625 = vweird.f32 %v619
    %vm626 = vmor %vm624, %vm625
    %v627 = vsel %vm626, %v619, %v623
    %v628 = vand.u32 2147483647, %v391
    %vm629 = vcmp.eq.f32.partialorder %v628, 8.507059e+37
    %v630 = vand.u32 %v391, 2147483648
    %v631 = vor.u32 1.1754944e-38, %v630
    %v632 = vsel %vm629, %v631, %v627
    %v633 = vmul.f32 1.0, %v632
    %v634 = vrcp.pop %v392
    %v635 = vmul.f32 %v392, %v634
    %v636 = vsub.f32 1.0, %v635
    %v637 = vmul.f32 %v634, %v636
    %v638 = vadd.f32 %v634, %v637
    %vm639 = vweird.f32 %v392
    %vm640 = vweird.f32 %v634
    %vm641 = vmor %vm639, %vm640
    %v642 = vsel %vm641, %v634, %v638
    %v643 = vand.u32 2147483647, %v392
    %vm644 = vcmp.eq.f32.partialorder %v643, 8.507059e+37
    %v645 = vand.u32 %v392, 2147483648
    %v646 = vor.u32 1.1754944e-38, %v645
    %v647 = vsel %vm644, %v646, %v642
    %v648 = vmul.f32 1.0, %v647
    %v649 = vrcp.pop %v393
    %v650 = vmul.f32 %v393, %v649
    %v651 = vsub.f32 1.0, %v650
    %v652 = vmul.f32 %v649, %v651
    %v653 = vadd.f32 %v649, %v652
    %vm654 = vweird.f32 %v393
    %vm655 = vweird.f32 %v649
    %vm656 = vmor %vm654, %vm655
    %v657 = vsel %vm656, %v649, %v653
    %v658 = vand.u32 2147483647, %v393
    %vm659 = vcmp.eq.f32.partialorder %v658, 8.507059e+37
    %v660 = vand.u32 %v393, 2147483648
    %v661 = vor.u32 1.1754944e-38, %v660
    %v662 = vsel %vm659, %v661, %v657
    %v663 = vmul.f32 1.0, %v662
    %v664 = vrcp.pop %v394
    %v665 = vmul.f32 %v394, %v664
    %v666 = vsub.f32 1.0, %v665
    %v667 = vmul.f32 %v664, %v666
    %v668 = vadd.f32 %v664, %v667
    %vm669 = vweird.f32 %v394
    %vm670 = vweird.f32 %v664
    %vm671 = vmor %vm669, %vm670
    %v672 = vsel %vm671, %v664, %v668
    %v673 = vand.u32 2147483647, %v394
    %vm674 = vcmp.eq.f32.partialorder %v673, 8.507059e+37
    %v675 = vand.u32 %v394, 2147483648
    %v676 = vor.u32 1.1754944e-38, %v675
    %v677 = vsel %vm674, %v676, %v672
    %v678 = vmul.f32 1.0, %v677
    %v679 = vrcp.pop %v395
    %v680 = vmul.f32 %v395, %v679
    %v681 = vsub.f32 1.0, %v680
    %v682 = vmul.f32 %v679, %v681
    %v683 = vadd.f32 %v679, %v682
    %vm684 = vweird.f32 %v395
    %vm685 = vweird.f32 %v679
    %vm686 = vmor %vm684, %vm685
    %v687 = vsel %vm686, %v679, %v683
    %v688 = vand.u32 2147483647, %v395
    %vm689 = vcmp.eq.f32.partialorder %v688, 8.507059e+37
    %v690 = vand.u32 %v395, 2147483648
    %v691 = vor.u32 1.1754944e-38, %v690
    %v692 = vsel %vm689, %v691, %v687
    %v693 = vmul.f32 1.0, %v692
    %v694 = vrcp.pop %v396
    %v695 = vmul.f32 %v396, %v694
    %v696 = vsub.f32 1.0, %v695
    %v697 = vmul.f32 %v694, %v696
    %v698 = vadd.f32 %v694, %v697
    %vm699 = vweird.f32 %v396
    %vm700 = vweird.f32 %v694
    %vm701 = vmor %vm699, %vm700
    %v702 = vsel %vm701, %v694, %v698
    %v703 = vand.u32 2147483647, %v396
    %vm704 = vcmp.eq.f32.partialorder %v703, 8.507059e+37
    %v705 = vand.u32 %v396, 2147483648
    %v706 = vor.u32 1.1754944e-38, %v705
    %v707 = vsel %vm704, %v706, %v702
    %v708 = vmul.f32 1.0, %v707
    %v709 = vrcp.pop %v397
    %v710 = vmul.f32 %v397, %v709
    %v711 = vsub.f32 1.0, %v710
    %v712 = vmul.f32 %v709, %v711
    %v713 = vadd.f32 %v709, %v712
    %vm714 = vweird.f32 %v397
    %vm715 = vweird.f32 %v709
    %vm716 = vmor %vm714, %vm715
    %v717 = vsel %vm716, %v709, %v713
    %v718 = vand.u32 2147483647, %v397
    %vm719 = vcmp.eq.f32.partialorder %v718, 8.507059e+37
    %v720 = vand.u32 %v397, 2147483648
    %v721 = vor.u32 1.1754944e-38, %v720
    %v722 = vsel %vm719, %v721, %v717
    %v723 = vmul.f32 1.0, %v722
    %v724 = vrcp.pop %v398
    %v725 = vmul.f32 %v398, %v724
    %v726 = vsub.f32 1.0, %v725
    %v727 = vmul.f32 %v724, %v726
    %v728 = vadd.f32 %v724, %v727
    %vm729 = vweird.f32 %v398
    %vm730 = vweird.f32 %v724
    %vm731 = vmor %vm729, %vm730
    %v732 = vsel %vm731, %v724, %v728
    %v733 = vand.u32 2147483647, %v398
    %vm734 = vcmp.eq.f32.partialorder %v733, 8.507059e+37
    %v735 = vand.u32 %v398, 2147483648
    %v736 = vor.u32 1.1754944e-38, %v735
    %v737 = vsel %vm734, %v736, %v732
    %v738 = vmul.f32 1.0, %v737
    %v739 = vrcp.pop %v399
    %v740 = vmul.f32 %v399, %v739
    %v741 = vsub.f32 1.0, %v740
    %v742 = vmul.f32 %v739, %v741
    %v743 = vadd.f32 %v739, %v742
    %vm744 = vweird.f32 %v399
    %vm745 = vweird.f32 %v739
    %vm746 = vmor %vm744, %vm745
    %v747 = vsel %vm746, %v739, %v743
    %v748 = vand.u32 2147483647, %v399
    %vm749 = vcmp.eq.f32.partialorder %v748, 8.507059e+37
    %v750 = vand.u32 %v399, 2147483648
    %v751 = vor.u32 1.1754944e-38, %v750
    %v752 = vsel %vm749, %v751, %v747
    %v753 = vmul.f32 1.0, %v752
    %v754 = vrcp.pop %v400
    %v755 = vmul.f32 %v400, %v754
    %v756 = vsub.f32 1.0, %v755
    %v757 = vmul.f32 %v754, %v756
    %v758 = vadd.f32 %v754, %v757
    %vm759 = vweird.f32 %v400
    %vm760 = vweird.f32 %v754
    %vm761 = vmor %vm759, %vm760
    %v762 = vsel %vm761, %v754, %v758
    %v763 = vand.u32 2147483647, %v400
    %vm764 = vcmp.eq.f32.partialorder %v763, 8.507059e+37
    %v765 = vand.u32 %v400, 2147483648
    %v766 = vor.u32 1.1754944e-38, %v765
    %v767 = vsel %vm764, %v766, %v762
    %v768 = vmul.f32 1.0, %v767
    %v769 = vrcp.pop %v401
    %v770 = vmul.f32 %v401, %v769
    %v771 = vsub.f32 1.0, %v770
    %v772 = vmul.f32 %v769, %v771
    %v773 = vadd.f32 %v769, %v772
    %vm774 = vweird.f32 %v401
    %vm775 = vweird.f32 %v769
    %vm776 = vmor %vm774, %vm775
    %v777 = vsel %vm776, %v769, %v773
    %v778 = vand.u32 2147483647, %v401
    %vm779 = vcmp.eq.f32.partialorder %v778, 8.507059e+37
    %v780 = vand.u32 %v401, 2147483648
    %v781 = vor.u32 1.1754944e-38, %v780
    %v782 = vsel %vm779, %v781, %v777
    %v783 = vmul.f32 1.0, %v782
    %v784 = vrcp.pop %v402
    %v785 = vmul.f32 %v402, %v784
    %v786 = vsub.f32 1.0, %v785
    %v787 = vmul.f32 %v784, %v786
    %v788 = vadd.f32 %v784, %v787
    %vm789 = vweird.f32 %v402
    %vm790 = vweird.f32 %v784
    %vm791 = vmor %vm789, %vm790
    %v792 = vsel %vm791, %v784, %v788
    %v793 = vand.u32 2147483647, %v402
    %vm794 = vcmp.eq.f32.partialorder %v793, 8.507059e+37
    %v795 = vand.u32 %v402, 2147483648
    %v796 = vor.u32 1.1754944e-38, %v795
    %v797 = vsel %vm794, %v796, %v792
    %v798 = vmul.f32 1.0, %v797
    %v799 = vrcp.pop %v403
    %v800 = vmul.f32 %v403, %v799
    %v801 = vsub.f32 1.0, %v800
    %v802 = vmul.f32 %v799, %v801
    %v803 = vadd.f32 %v799, %v802
    %vm804 = vweird.f32 %v403
    %vm805 = vweird.f32 %v799
    %vm806 = vmor %vm804, %vm805
    %v807 = vsel %vm806, %v799, %v803
    %v808 = vand.u32 2147483647, %v403
    %vm809 = vcmp.eq.f32.partialorder %v808, 8.507059e+37
    %v810 = vand.u32 %v403, 2147483648
    %v811 = vor.u32 1.1754944e-38, %v810
    %v812 = vsel %vm809, %v811, %v807
    %v813 = vmul.f32 1.0, %v812
    %v814 = vrcp.pop %v404
    %v815 = vmul.f32 %v404, %v814
    %v816 = vsub.f32 1.0, %v815
    %v817 = vmul.f32 %v814, %v816
    %v818 = vadd.f32 %v814, %v817
    %vm819 = vweird.f32 %v404
    %vm820 = vweird.f32 %v814
    %vm821 = vmor %vm819, %vm820
    %v822 = vsel %vm821, %v814, %v818
    %v823 = vand.u32 2147483647, %v404
    %vm824 = vcmp.eq.f32.partialorder %v823, 8.507059e+37
    %v825 = vand.u32 %v404, 2147483648
    %v826 = vor.u32 1.1754944e-38, %v825
    %v827 = vsel %vm824, %v826, %v822
    %v828 = vmul.f32 1.0, %v827
    %v829 = vrcp.pop %v405
    %v830 = vmul.f32 %v405, %v829
    %v831 = vsub.f32 1.0, %v830
    %v832 = vmul.f32 %v829, %v831
    %v833 = vadd.f32 %v829, %v832
    %vm834 = vweird.f32 %v405
    %vm835 = vweird.f32 %v829
    %vm836 = vmor %vm834, %vm835
    %v837 = vsel %vm836, %v829, %v833
    %v838 = vand.u32 2147483647, %v405
    %vm839 = vcmp.eq.f32.partialorder %v838, 8.507059e+37
    %v840 = vand.u32 %v405, 2147483648
    %v841 = vor.u32 1.1754944e-38, %v840
    %v842 = vsel %vm839, %v841, %v837
    %v843 = vmul.f32 1.0, %v842
    %v844 = vrcp.pop %v406
    %v845 = vmul.f32 %v406, %v844
    %v846 = vsub.f32 1.0, %v845
    %v847 = vmul.f32 %v844, %v846
    %v848 = vadd.f32 %v844, %v847
    %vm849 = vweird.f32 %v406
    %vm850 = vweird.f32 %v844
    %vm851 = vmor %vm849, %vm850
    %v852 = vsel %vm851, %v844, %v848
    %v853 = vand.u32 2147483647, %v406
    %vm854 = vcmp.eq.f32.partialorder %v853, 8.507059e+37
    %v855 = vand.u32 %v406, 2147483648
    %v856 = vor.u32 1.1754944e-38, %v855
    %v857 = vsel %vm854, %v856, %v852
    %v858 = vmul.f32 1.0, %v857
    %v859 = vrcp.pop %v407
    %v860 = vmul.f32 %v407, %v859
    %v861 = vsub.f32 1.0, %v860
    %v862 = vmul.f32 %v859, %v861
    %v863 = vadd.f32 %v859, %v862
    %vm864 = vweird.f32 %v407
    %vm865 = vweird.f32 %v859
    %vm866 = vmor %vm864, %vm865
    %v867 = vsel %vm866, %v859, %v863
    %v868 = vand.u32 2147483647, %v407
    %vm869 = vcmp.eq.f32.partialorder %v868, 8.507059e+37
    %v870 = vand.u32 %v407, 2147483648
    %v871 = vor.u32 1.1754944e-38, %v870
    %v872 = vsel %vm869, %v871, %v867
    %v873 = vmul.f32 1.0, %v872
    %v874 = vrcp.pop %v408
    %v875 = vmul.f32 %v408, %v874
    %v876 = vsub.f32 1.0, %v875
    %v877 = vmul.f32 %v874, %v876
    %v878 = vadd.f32 %v874, %v877
    %vm879 = vweird.f32 %v408
    %vm880 = vweird.f32 %v874
    %vm881 = vmor %vm879, %vm880
    %v882 = vsel %vm881, %v874, %v878
    %v883 = vand.u32 2147483647, %v408
    %vm884 = vcmp.eq.f32.partialorder %v883, 8.507059e+37
    %v885 = vand.u32 %v408, 2147483648
    %v886 = vor.u32 1.1754944e-38, %v885
    %v887 = vsel %vm884, %v886, %v882
    %v888 = vmul.f32 1.0, %v887
    %v889 = vld [vmem:[%s3] sm:$0xff]
    %v890 = vld [vmem:[%s3 + $0x8] sm:$0xff]
    %v891 = vld [vmem:[%s3 + $0x10] sm:$0xff]
    %v892 = vld [vmem:[%s3 + $0x18] sm:$0xff]
    %v893 = vld [vmem:[%s3 + $0x20] sm:$0xff]
    %v894 = vld [vmem:[%s3 + $0x28] sm:$0xff]
    %v895 = vld [vmem:[%s3 + $0x30] sm:$0xff]
    %v896 = vld [vmem:[%s3 + $0x38] sm:$0xff]
    %v897 = vld [vmem:[%s3 + $0x40] sm:$0xff]
    %v898 = vld [vmem:[%s3 + $0x48] sm:$0xff]
    %v899 = vld [vmem:[%s3 + $0x50] sm:$0xff]
    %v900 = vld [vmem:[%s3 + $0x58] sm:$0xff]
    %v901 = vld [vmem:[%s3 + $0x60] sm:$0xff]
    %v902 = vld [vmem:[%s3 + $0x68] sm:$0xff]
    %v903 = vld [vmem:[%s3 + $0x70] sm:$0xff]
    %v904 = vld [vmem:[%s3 + $0x78] sm:$0xff]
    %v905 = vld [vmem:[%s4] sm:$0x1]
    %v907 = vperm.slane %v905, 0
    %909 = vmatpush.msra.mxu0 %v904
    %910 = vmatpush.msra.mxu0 %v903
    %911 = vmatpush.msra.mxu0 %v902
    %912 = vmatpush.msra.mxu0 %v901
    %913 = vmatpush.msra.mxu0 %v900
    %914 = vmatpush.msra.mxu0 %v899
    %915 = vmatpush.msra.mxu0 %v898
    %916 = vmatpush.msra.mxu0 %v897
    %917 = vmatpush.msra.mxu0 %v896
    %918 = vmatpush.msra.mxu0 %v895
    %919 = vmatpush.msra.mxu0 %v894
    %920 = vmatpush.msra.mxu0 %v893
    %921 = vmatpush.msra.mxu0 %v892
    %922 = vmatpush.msra.mxu0 %v891
    %923 = vmatpush.msra.mxu0 %v890
    %924 = vmatpush.msra.mxu0 %v889
    %925 = vmatmul.f32.gmra.mxu0 %v423
    %v926 = vpop.f32.mrf.mxu0
    %v927 = vadd.f32 %v907, %v926
    %928 = vmatmul.f32.gmra.mxu0 %v438
    %v929 = vpop.f32.mrf.mxu0
    %v930 = vadd.f32 %v907, %v929
    %931 = vmatmul.f32.gmra.mxu0 %v453
    %v932 = vpop.f32.mrf.mxu0
    %v933 = vadd.f32 %v907, %v932
    %934 = vmatmul.f32.gmra.mxu0 %v468
    %v935 = vpop.f32.mrf.mxu0
    %v936 = vadd.f32 %v907, %v935
    %937 = vmatmul.f32.gmra.mxu0 %v483
    %v938 = vpop.f32.mrf.mxu0
    %v939 = vadd.f32 %v907, %v938
    %940 = vmatmul.f32.gmra.mxu0 %v498
    %v941 = vpop.f32.mrf.mxu0
    %v942 = vadd.f32 %v907, %v941
    %943 = vmatmul.f32.gmra.mxu0 %v513
    %v944 = vpop.f32.mrf.mxu0
    %v945 = vadd.f32 %v907, %v944
    %946 = vmatmul.f32.gmra.mxu0 %v528
    %v947 = vpop.f32.mrf.mxu0
    %v948 = vadd.f32 %v907, %v947
    %949 = vmatmul.f32.gmra.mxu0 %v543
    %v950 = vpop.f32.mrf.mxu0
    %v951 = vadd.f32 %v907, %v950
    %952 = vmatmul.f32.gmra.mxu0 %v558
    %v953 = vpop.f32.mrf.mxu0
    %v954 = vadd.f32 %v907, %v953
    %955 = vmatmul.f32.gmra.mxu0 %v573
    %v956 = vpop.f32.mrf.mxu0
    %v957 = vadd.f32 %v907, %v956
    %958 = vmatmul.f32.gmra.mxu0 %v588
    %v959 = vpop.f32.mrf.mxu0
    %v960 = vadd.f32 %v907, %v959
    %961 = vmatmul.f32.gmra.mxu0 %v603
    %v962 = vpop.f32.mrf.mxu0
    %v963 = vadd.f32 %v907, %v962
    %964 = vmatmul.f32.gmra.mxu0 %v618
    %v965 = vpop.f32.mrf.mxu0
    %v966 = vadd.f32 %v907, %v965
    %967 = vmatmul.f32.gmra.mxu0 %v633
    %v968 = vpop.f32.mrf.mxu0
    %v969 = vadd.f32 %v907, %v968
    %970 = vmatmul.f32.gmra.mxu0 %v648
    %v971 = vpop.f32.mrf.mxu0
    %v972 = vadd.f32 %v907, %v971
    %973 = vmatmul.f32.gmra.mxu0 %v663
    %v974 = vpop.f32.mrf.mxu0
    %v975 = vadd.f32 %v907, %v974
    %976 = vmatmul.f32.gmra.mxu0 %v678
    %v977 = vpop.f32.mrf.mxu0
    %v978 = vadd.f32 %v907, %v977
    %979 = vmatmul.f32.gmra.mxu0 %v693
    %v980 = vpop.f32.mrf.mxu0
    %v981 = vadd.f32 %v907, %v980
    %982 = vmatmul.f32.gmra.mxu0 %v708
    %v983 = vpop.f32.mrf.mxu0
    %v984 = vadd.f32 %v907, %v983
    %985 = vmatmul.f32.gmra.mxu0 %v723
    %v986 = vpop.f32.mrf.mxu0
    %v987 = vadd.f32 %v907, %v986
    %988 = vmatmul.f32.gmra.mxu0 %v738
    %v989 = vpop.f32.mrf.mxu0
    %v990 = vadd.f32 %v907, %v989
    %991 = vmatmul.f32.gmra.mxu0 %v753
    %v992 = vpop.f32.mrf.mxu0
    %v993 = vadd.f32 %v907, %v992
    %994 = vmatmul.f32.gmra.mxu0 %v768
    %v995 = vpop.f32.mrf.mxu0
    %v996 = vadd.f32 %v907, %v995
    %997 = vmatmul.f32.gmra.mxu0 %v783
    %v998 = vpop.f32.mrf.mxu0
    %v999 = vadd.f32 %v907, %v998
    %1000 = vmatmul.f32.gmra.mxu0 %v798
    %v1001 = vpop.f32.mrf.mxu0
    %v1002 = vadd.f32 %v907, %v1001
    %1003 = vmatmul.f32.gmra.mxu0 %v813
    %v1004 = vpop.f32.mrf.mxu0
    %v1005 = vadd.f32 %v907, %v1004
    %1006 = vmatmul.f32.gmra.mxu0 %v828
    %v1007 = vpop.f32.mrf.mxu0
    %v1008 = vadd.f32 %v907, %v1007
    %1009 = vmatmul.f32.gmra.mxu0 %v843
    %v1010 = vpop.f32.mrf.mxu0
    %v1011 = vadd.f32 %v907, %v1010
    %1012 = vmatmul.f32.gmra.mxu0 %v858
    %v1013 = vpop.f32.mrf.mxu0
    %v1014 = vadd.f32 %v907, %v1013
    %1015 = vmatmul.f32.gmra.mxu0 %v873
    %v1016 = vpop.f32.mrf.mxu0
    %v1017 = vadd.f32 %v907, %v1016
    %1018 = vmatmul.f32.gmra.mxu0 %v888
    %v1019 = vpop.f32.mrf.mxu0
    %v1020 = vadd.f32 %v907, %v1019
    %1021 = vdwg.mxu0
    %v1022 = vxor.u32 %v927, 2147483648
    %v1023 = vxor.u32 %v930, 2147483648
    %v1024 = vxor.u32 %v933, 2147483648
    %v1025 = vxor.u32 %v936, 2147483648
    %v1026 = vxor.u32 %v939, 2147483648
    %v1027 = vxor.u32 %v942, 2147483648
    %v1028 = vxor.u32 %v945, 2147483648
    %v1029 = vxor.u32 %v948, 2147483648
    %v1030 = vxor.u32 %v951, 2147483648
    %v1031 = vxor.u32 %v954, 2147483648
    %v1032 = vxor.u32 %v957, 2147483648
    %v1033 = vxor.u32 %v960, 2147483648
    %v1034 = vxor.u32 %v963, 2147483648
    %v1035 = vxor.u32 %v966, 2147483648
    %v1036 = vxor.u32 %v969, 2147483648
    %v1037 = vxor.u32 %v972, 2147483648
    %v1038 = vxor.u32 %v975, 2147483648
    %v1039 = vxor.u32 %v978, 2147483648
    %v1040 = vxor.u32 %v981, 2147483648
    %v1041 = vxor.u32 %v984, 2147483648
    %v1042 = vxor.u32 %v987, 2147483648
    %v1043 = vxor.u32 %v990, 2147483648
    %v1044 = vxor.u32 %v993, 2147483648
    %v1045 = vxor.u32 %v996, 2147483648
    %v1046 = vxor.u32 %v999, 2147483648
    %v1047 = vxor.u32 %v1002, 2147483648
    %v1048 = vxor.u32 %v1005, 2147483648
    %v1049 = vxor.u32 %v1008, 2147483648
    %v1050 = vxor.u32 %v1011, 2147483648
    %v1051 = vxor.u32 %v1014, 2147483648
    %v1052 = vxor.u32 %v1017, 2147483648
    %v1053 = vxor.u32 %v1020, 2147483648
    %v1054 = vmul.f32 %v1022, 1.442695
    %v1055 = vpow.pop %v1054
    %v1056 = vmul.f32 %v1023, 1.442695
    %v1057 = vpow.pop %v1056
    %v1058 = vmul.f32 %v1024, 1.442695
    %v1059 = vpow.pop %v1058
    %v1060 = vmul.f32 %v1025, 1.442695
    %v1061 = vpow.pop %v1060
    %v1062 = vmul.f32 %v1026, 1.442695
    %v1063 = vpow.pop %v1062
    %v1064 = vmul.f32 %v1027, 1.442695
    %v1065 = vpow.pop %v1064
    %v1066 = vmul.f32 %v1028, 1.442695
    %v1067 = vpow.pop %v1066
    %v1068 = vmul.f32 %v1029, 1.442695
    %v1069 = vpow.pop %v1068
    %v1070 = vmul.f32 %v1030, 1.442695
    %v1071 = vpow.pop %v1070
    %v1072 = vmul.f32 %v1031, 1.442695
    %v1073 = vpow.pop %v1072
    %v1074 = vmul.f32 %v1032, 1.442695
    %v1075 = vpow.pop %v1074
    %v1076 = vmul.f32 %v1033, 1.442695
    %v1077 = vpow.pop %v1076
    %v1078 = vmul.f32 %v1034, 1.442695
    %v1079 = vpow.pop %v1078
    %v1080 = vmul.f32 %v1035, 1.442695
    %v1081 = vpow.pop %v1080
    %v1082 = vmul.f32 %v1036, 1.442695
    %v1083 = vpow.pop %v1082
    %v1084 = vmul.f32 %v1037, 1.442695
    %v1085 = vpow.pop %v1084
    %v1086 = vmul.f32 %v1038, 1.442695
    %v1087 = vpow.pop %v1086
    %v1088 = vmul.f32 %v1039, 1.442695
    %v1089 = vpow.pop %v1088
    %v1090 = vmul.f32 %v1040, 1.442695
    %v1091 = vpow.pop %v1090
    %v1092 = vmul.f32 %v1041, 1.442695
    %v1093 = vpow.pop %v1092
    %v1094 = vmul.f32 %v1042, 1.442695
    %v1095 = vpow.pop %v1094
    %v1096 = vmul.f32 %v1043, 1.442695
    %v1097 = vpow.pop %v1096
    %v1098 = vmul.f32 %v1044, 1.442695
    %v1099 = vpow.pop %v1098
    %v1100 = vmul.f32 %v1045, 1.442695
    %v1101 = vpow.pop %v1100
    %v1102 = vmul.f32 %v1046, 1.442695
    %v1103 = vpow.pop %v1102
    %v1104 = vmul.f32 %v1047, 1.442695
    %v1105 = vpow.pop %v1104
    %v1106 = vmul.f32 %v1048, 1.442695
    %v1107 = vpow.pop %v1106
    %v1108 = vmul.f32 %v1049, 1.442695
    %v1109 = vpow.pop %v1108
    %v1110 = vmul.f32 %v1050, 1.442695
    %v1111 = vpow.pop %v1110
    %v1112 = vmul.f32 %v1051, 1.442695
    %v1113 = vpow.pop %v1112
    %v1114 = vmul.f32 %v1052, 1.442695
    %v1115 = vpow.pop %v1114
    %v1116 = vmul.f32 %v1053, 1.442695
    %v1117 = vpow.pop %v1116
    %v1118 = vadd.f32 %v1055, 1.0
    %v1119 = vadd.f32 %v1057, 1.0
    %v1120 = vadd.f32 %v1059, 1.0
    %v1121 = vadd.f32 %v1061, 1.0
    %v1122 = vadd.f32 %v1063, 1.0
    %v1123 = vadd.f32 %v1065, 1.0
    %v1124 = vadd.f32 %v1067, 1.0
    %v1125 = vadd.f32 %v1069, 1.0
    %v1126 = vadd.f32 %v1071, 1.0
    %v1127 = vadd.f32 %v1073, 1.0
    %v1128 = vadd.f32 %v1075, 1.0
    %v1129 = vadd.f32 %v1077, 1.0
    %v1130 = vadd.f32 %v1079, 1.0
    %v1131 = vadd.f32 %v1081, 1.0
    %v1132 = vadd.f32 %v1083, 1.0
    %v1133 = vadd.f32 %v1085, 1.0
    %v1134 = vadd.f32 %v1087, 1.0
    %v1135 = vadd.f32 %v1089, 1.0
    %v1136 = vadd.f32 %v1091, 1.0
    %v1137 = vadd.f32 %v1093, 1.0
    %v1138 = vadd.f32 %v1095, 1.0
    %v1139 = vadd.f32 %v1097, 1.0
    %v1140 = vadd.f32 %v1099, 1.0
    %v1141 = vadd.f32 %v1101, 1.0
    %v1142 = vadd.f32 %v1103, 1.0
    %v1143 = vadd.f32 %v1105, 1.0
    %v1144 = vadd.f32 %v1107, 1.0
    %v1145 = vadd.f32 %v1109, 1.0
    %v1146 = vadd.f32 %v1111, 1.0
    %v1147 = vadd.f32 %v1113, 1.0
    %v1148 = vadd.f32 %v1115, 1.0
    %v1149 = vadd.f32 %v1117, 1.0
    %v1150 = vrcp.pop %v1118
    %v1151 = vmul.f32 %v1118, %v1150
    %v1152 = vsub.f32 1.0, %v1151
    %v1153 = vmul.f32 %v1150, %v1152
    %v1154 = vadd.f32 %v1150, %v1153
    %vm1155 = vweird.f32 %v1118
    %vm1156 = vweird.f32 %v1150
    %vm1157 = vmor %vm1155, %vm1156
    %v1158 = vsel %vm1157, %v1150, %v1154
    %v1159 = vand.u32 2147483647, %v1118
    %vm1160 = vcmp.eq.f32.partialorder %v1159, 8.507059e+37
    %v1161 = vand.u32 %v1118, 2147483648
    %v1162 = vor.u32 1.1754944e-38, %v1161
    %v1163 = vsel %vm1160, %v1162, %v1158
    %v1164 = vmul.f32 1.0, %v1163
    %v1165 = vrcp.pop %v1119
    %v1166 = vmul.f32 %v1119, %v1165
    %v1167 = vsub.f32 1.0, %v1166
    %v1168 = vmul.f32 %v1165, %v1167
    %v1169 = vadd.f32 %v1165, %v1168
    %vm1170 = vweird.f32 %v1119
    %vm1171 = vweird.f32 %v1165
    %vm1172 = vmor %vm1170, %vm1171
    %v1173 = vsel %vm1172, %v1165, %v1169
    %v1174 = vand.u32 2147483647, %v1119
    %vm1175 = vcmp.eq.f32.partialorder %v1174, 8.507059e+37
    %v1176 = vand.u32 %v1119, 2147483648
    %v1177 = vor.u32 1.1754944e-38, %v1176
    %v1178 = vsel %vm1175, %v1177, %v1173
    %v1179 = vmul.f32 1.0, %v1178
    %v1180 = vrcp.pop %v1120
    %v1181 = vmul.f32 %v1120, %v1180
    %v1182 = vsub.f32 1.0, %v1181
    %v1183 = vmul.f32 %v1180, %v1182
    %v1184 = vadd.f32 %v1180, %v1183
    %vm1185 = vweird.f32 %v1120
    %vm1186 = vweird.f32 %v1180
    %vm1187 = vmor %vm1185, %vm1186
    %v1188 = vsel %vm1187, %v1180, %v1184
    %v1189 = vand.u32 2147483647, %v1120
    %vm1190 = vcmp.eq.f32.partialorder %v1189, 8.507059e+37
    %v1191 = vand.u32 %v1120, 2147483648
    %v1192 = vor.u32 1.1754944e-38, %v1191
    %v1193 = vsel %vm1190, %v1192, %v1188
    %v1194 = vmul.f32 1.0, %v1193
    %v1195 = vrcp.pop %v1121
    %v1196 = vmul.f32 %v1121, %v1195
    %v1197 = vsub.f32 1.0, %v1196
    %v1198 = vmul.f32 %v1195, %v1197
    %v1199 = vadd.f32 %v1195, %v1198
    %vm1200 = vweird.f32 %v1121
    %vm1201 = vweird.f32 %v1195
    %vm1202 = vmor %vm1200, %vm1201
    %v1203 = vsel %vm1202, %v1195, %v1199
    %v1204 = vand.u32 2147483647, %v1121
    %vm1205 = vcmp.eq.f32.partialorder %v1204, 8.507059e+37
    %v1206 = vand.u32 %v1121, 2147483648
    %v1207 = vor.u32 1.1754944e-38, %v1206
    %v1208 = vsel %vm1205, %v1207, %v1203
    %v1209 = vmul.f32 1.0, %v1208
    %v1210 = vrcp.pop %v1122
    %v1211 = vmul.f32 %v1122, %v1210
    %v1212 = vsub.f32 1.0, %v1211
    %v1213 = vmul.f32 %v1210, %v1212
    %v1214 = vadd.f32 %v1210, %v1213
    %vm1215 = vweird.f32 %v1122
    %vm1216 = vweird.f32 %v1210
    %vm1217 = vmor %vm1215, %vm1216
    %v1218 = vsel %vm1217, %v1210, %v1214
    %v1219 = vand.u32 2147483647, %v1122
    %vm1220 = vcmp.eq.f32.partialorder %v1219, 8.507059e+37
    %v1221 = vand.u32 %v1122, 2147483648
    %v1222 = vor.u32 1.1754944e-38, %v1221
    %v1223 = vsel %vm1220, %v1222, %v1218
    %v1224 = vmul.f32 1.0, %v1223
    %v1225 = vrcp.pop %v1123
    %v1226 = vmul.f32 %v1123, %v1225
    %v1227 = vsub.f32 1.0, %v1226
    %v1228 = vmul.f32 %v1225, %v1227
    %v1229 = vadd.f32 %v1225, %v1228
    %vm1230 = vweird.f32 %v1123
    %vm1231 = vweird.f32 %v1225
    %vm1232 = vmor %vm1230, %vm1231
    %v1233 = vsel %vm1232, %v1225, %v1229
    %v1234 = vand.u32 2147483647, %v1123
    %vm1235 = vcmp.eq.f32.partialorder %v1234, 8.507059e+37
    %v1236 = vand.u32 %v1123, 2147483648
    %v1237 = vor.u32 1.1754944e-38, %v1236
    %v1238 = vsel %vm1235, %v1237, %v1233
    %v1239 = vmul.f32 1.0, %v1238
    %v1240 = vrcp.pop %v1124
    %v1241 = vmul.f32 %v1124, %v1240
    %v1242 = vsub.f32 1.0, %v1241
    %v1243 = vmul.f32 %v1240, %v1242
    %v1244 = vadd.f32 %v1240, %v1243
    %vm1245 = vweird.f32 %v1124
    %vm1246 = vweird.f32 %v1240
    %vm1247 = vmor %vm1245, %vm1246
    %v1248 = vsel %vm1247, %v1240, %v1244
    %v1249 = vand.u32 2147483647, %v1124
    %vm1250 = vcmp.eq.f32.partialorder %v1249, 8.507059e+37
    %v1251 = vand.u32 %v1124, 2147483648
    %v1252 = vor.u32 1.1754944e-38, %v1251
    %v1253 = vsel %vm1250, %v1252, %v1248
    %v1254 = vmul.f32 1.0, %v1253
    %v1255 = vrcp.pop %v1125
    %v1256 = vmul.f32 %v1125, %v1255
    %v1257 = vsub.f32 1.0, %v1256
    %v1258 = vmul.f32 %v1255, %v1257
    %v1259 = vadd.f32 %v1255, %v1258
    %vm1260 = vweird.f32 %v1125
    %vm1261 = vweird.f32 %v1255
    %vm1262 = vmor %vm1260, %vm1261
    %v1263 = vsel %vm1262, %v1255, %v1259
    %v1264 = vand.u32 2147483647, %v1125
    %vm1265 = vcmp.eq.f32.partialorder %v1264, 8.507059e+37
    %v1266 = vand.u32 %v1125, 2147483648
    %v1267 = vor.u32 1.1754944e-38, %v1266
    %v1268 = vsel %vm1265, %v1267, %v1263
    %v1269 = vmul.f32 1.0, %v1268
    %v1270 = vrcp.pop %v1126
    %v1271 = vmul.f32 %v1126, %v1270
    %v1272 = vsub.f32 1.0, %v1271
    %v1273 = vmul.f32 %v1270, %v1272
    %v1274 = vadd.f32 %v1270, %v1273
    %vm1275 = vweird.f32 %v1126
    %vm1276 = vweird.f32 %v1270
    %vm1277 = vmor %vm1275, %vm1276
    %v1278 = vsel %vm1277, %v1270, %v1274
    %v1279 = vand.u32 2147483647, %v1126
    %vm1280 = vcmp.eq.f32.partialorder %v1279, 8.507059e+37
    %v1281 = vand.u32 %v1126, 2147483648
    %v1282 = vor.u32 1.1754944e-38, %v1281
    %v1283 = vsel %vm1280, %v1282, %v1278
    %v1284 = vmul.f32 1.0, %v1283
    %v1285 = vrcp.pop %v1127
    %v1286 = vmul.f32 %v1127, %v1285
    %v1287 = vsub.f32 1.0, %v1286
    %v1288 = vmul.f32 %v1285, %v1287
    %v1289 = vadd.f32 %v1285, %v1288
    %vm1290 = vweird.f32 %v1127
    %vm1291 = vweird.f32 %v1285
    %vm1292 = vmor %vm1290, %vm1291
    %v1293 = vsel %vm1292, %v1285, %v1289
    %v1294 = vand.u32 2147483647, %v1127
    %vm1295 = vcmp.eq.f32.partialorder %v1294, 8.507059e+37
    %v1296 = vand.u32 %v1127, 2147483648
    %v1297 = vor.u32 1.1754944e-38, %v1296
    %v1298 = vsel %vm1295, %v1297, %v1293
    %v1299 = vmul.f32 1.0, %v1298
    %v1300 = vrcp.pop %v1128
    %v1301 = vmul.f32 %v1128, %v1300
    %v1302 = vsub.f32 1.0, %v1301
    %v1303 = vmul.f32 %v1300, %v1302
    %v1304 = vadd.f32 %v1300, %v1303
    %vm1305 = vweird.f32 %v1128
    %vm1306 = vweird.f32 %v1300
    %vm1307 = vmor %vm1305, %vm1306
    %v1308 = vsel %vm1307, %v1300, %v1304
    %v1309 = vand.u32 2147483647, %v1128
    %vm1310 = vcmp.eq.f32.partialorder %v1309, 8.507059e+37
    %v1311 = vand.u32 %v1128, 2147483648
    %v1312 = vor.u32 1.1754944e-38, %v1311
    %v1313 = vsel %vm1310, %v1312, %v1308
    %v1314 = vmul.f32 1.0, %v1313
    %v1315 = vrcp.pop %v1129
    %v1316 = vmul.f32 %v1129, %v1315
    %v1317 = vsub.f32 1.0, %v1316
    %v1318 = vmul.f32 %v1315, %v1317
    %v1319 = vadd.f32 %v1315, %v1318
    %vm1320 = vweird.f32 %v1129
    %vm1321 = vweird.f32 %v1315
    %vm1322 = vmor %vm1320, %vm1321
    %v1323 = vsel %vm1322, %v1315, %v1319
    %v1324 = vand.u32 2147483647, %v1129
    %vm1325 = vcmp.eq.f32.partialorder %v1324, 8.507059e+37
    %v1326 = vand.u32 %v1129, 2147483648
    %v1327 = vor.u32 1.1754944e-38, %v1326
    %v1328 = vsel %vm1325, %v1327, %v1323
    %v1329 = vmul.f32 1.0, %v1328
    %v1330 = vrcp.pop %v1130
    %v1331 = vmul.f32 %v1130, %v1330
    %v1332 = vsub.f32 1.0, %v1331
    %v1333 = vmul.f32 %v1330, %v1332
    %v1334 = vadd.f32 %v1330, %v1333
    %vm1335 = vweird.f32 %v1130
    %vm1336 = vweird.f32 %v1330
    %vm1337 = vmor %vm1335, %vm1336
    %v1338 = vsel %vm1337, %v1330, %v1334
    %v1339 = vand.u32 2147483647, %v1130
    %vm1340 = vcmp.eq.f32.partialorder %v1339, 8.507059e+37
    %v1341 = vand.u32 %v1130, 2147483648
    %v1342 = vor.u32 1.1754944e-38, %v1341
    %v1343 = vsel %vm1340, %v1342, %v1338
    %v1344 = vmul.f32 1.0, %v1343
    %v1345 = vrcp.pop %v1131
    %v1346 = vmul.f32 %v1131, %v1345
    %v1347 = vsub.f32 1.0, %v1346
    %v1348 = vmul.f32 %v1345, %v1347
    %v1349 = vadd.f32 %v1345, %v1348
    %vm1350 = vweird.f32 %v1131
    %vm1351 = vweird.f32 %v1345
    %vm1352 = vmor %vm1350, %vm1351
    %v1353 = vsel %vm1352, %v1345, %v1349
    %v1354 = vand.u32 2147483647, %v1131
    %vm1355 = vcmp.eq.f32.partialorder %v1354, 8.507059e+37
    %v1356 = vand.u32 %v1131, 2147483648
    %v1357 = vor.u32 1.1754944e-38, %v1356
    %v1358 = vsel %vm1355, %v1357, %v1353
    %v1359 = vmul.f32 1.0, %v1358
    %v1360 = vrcp.pop %v1132
    %v1361 = vmul.f32 %v1132, %v1360
    %v1362 = vsub.f32 1.0, %v1361
    %v1363 = vmul.f32 %v1360, %v1362
    %v1364 = vadd.f32 %v1360, %v1363
    %vm1365 = vweird.f32 %v1132
    %vm1366 = vweird.f32 %v1360
    %vm1367 = vmor %vm1365, %vm1366
    %v1368 = vsel %vm1367, %v1360, %v1364
    %v1369 = vand.u32 2147483647, %v1132
    %vm1370 = vcmp.eq.f32.partialorder %v1369, 8.507059e+37
    %v1371 = vand.u32 %v1132, 2147483648
    %v1372 = vor.u32 1.1754944e-38, %v1371
    %v1373 = vsel %vm1370, %v1372, %v1368
    %v1374 = vmul.f32 1.0, %v1373
    %v1375 = vrcp.pop %v1133
    %v1376 = vmul.f32 %v1133, %v1375
    %v1377 = vsub.f32 1.0, %v1376
    %v1378 = vmul.f32 %v1375, %v1377
    %v1379 = vadd.f32 %v1375, %v1378
    %vm1380 = vweird.f32 %v1133
    %vm1381 = vweird.f32 %v1375
    %vm1382 = vmor %vm1380, %vm1381
    %v1383 = vsel %vm1382, %v1375, %v1379
    %v1384 = vand.u32 2147483647, %v1133
    %vm1385 = vcmp.eq.f32.partialorder %v1384, 8.507059e+37
    %v1386 = vand.u32 %v1133, 2147483648
    %v1387 = vor.u32 1.1754944e-38, %v1386
    %v1388 = vsel %vm1385, %v1387, %v1383
    %v1389 = vmul.f32 1.0, %v1388
    %v1390 = vrcp.pop %v1134
    %v1391 = vmul.f32 %v1134, %v1390
    %v1392 = vsub.f32 1.0, %v1391
    %v1393 = vmul.f32 %v1390, %v1392
    %v1394 = vadd.f32 %v1390, %v1393
    %vm1395 = vweird.f32 %v1134
    %vm1396 = vweird.f32 %v1390
    %vm1397 = vmor %vm1395, %vm1396
    %v1398 = vsel %vm1397, %v1390, %v1394
    %v1399 = vand.u32 2147483647, %v1134
    %vm1400 = vcmp.eq.f32.partialorder %v1399, 8.507059e+37
    %v1401 = vand.u32 %v1134, 2147483648
    %v1402 = vor.u32 1.1754944e-38, %v1401
    %v1403 = vsel %vm1400, %v1402, %v1398
    %v1404 = vmul.f32 1.0, %v1403
    %v1405 = vrcp.pop %v1135
    %v1406 = vmul.f32 %v1135, %v1405
    %v1407 = vsub.f32 1.0, %v1406
    %v1408 = vmul.f32 %v1405, %v1407
    %v1409 = vadd.f32 %v1405, %v1408
    %vm1410 = vweird.f32 %v1135
    %vm1411 = vweird.f32 %v1405
    %vm1412 = vmor %vm1410, %vm1411
    %v1413 = vsel %vm1412, %v1405, %v1409
    %v1414 = vand.u32 2147483647, %v1135
    %vm1415 = vcmp.eq.f32.partialorder %v1414, 8.507059e+37
    %v1416 = vand.u32 %v1135, 2147483648
    %v1417 = vor.u32 1.1754944e-38, %v1416
    %v1418 = vsel %vm1415, %v1417, %v1413
    %v1419 = vmul.f32 1.0, %v1418
    %v1420 = vrcp.pop %v1136
    %v1421 = vmul.f32 %v1136, %v1420
    %v1422 = vsub.f32 1.0, %v1421
    %v1423 = vmul.f32 %v1420, %v1422
    %v1424 = vadd.f32 %v1420, %v1423
    %vm1425 = vweird.f32 %v1136
    %vm1426 = vweird.f32 %v1420
    %vm1427 = vmor %vm1425, %vm1426
    %v1428 = vsel %vm1427, %v1420, %v1424
    %v1429 = vand.u32 2147483647, %v1136
    %vm1430 = vcmp.eq.f32.partialorder %v1429, 8.507059e+37
    %v1431 = vand.u32 %v1136, 2147483648
    %v1432 = vor.u32 1.1754944e-38, %v1431
    %v1433 = vsel %vm1430, %v1432, %v1428
    %v1434 = vmul.f32 1.0, %v1433
    %v1435 = vrcp.pop %v1137
    %v1436 = vmul.f32 %v1137, %v1435
    %v1437 = vsub.f32 1.0, %v1436
    %v1438 = vmul.f32 %v1435, %v1437
    %v1439 = vadd.f32 %v1435, %v1438
    %vm1440 = vweird.f32 %v1137
    %vm1441 = vweird.f32 %v1435
    %vm1442 = vmor %vm1440, %vm1441
    %v1443 = vsel %vm1442, %v1435, %v1439
    %v1444 = vand.u32 2147483647, %v1137
    %vm1445 = vcmp.eq.f32.partialorder %v1444, 8.507059e+37
    %v1446 = vand.u32 %v1137, 2147483648
    %v1447 = vor.u32 1.1754944e-38, %v1446
    %v1448 = vsel %vm1445, %v1447, %v1443
    %v1449 = vmul.f32 1.0, %v1448
    %v1450 = vrcp.pop %v1138
    %v1451 = vmul.f32 %v1138, %v1450
    %v1452 = vsub.f32 1.0, %v1451
    %v1453 = vmul.f32 %v1450, %v1452
    %v1454 = vadd.f32 %v1450, %v1453
    %vm1455 = vweird.f32 %v1138
    %vm1456 = vweird.f32 %v1450
    %vm1457 = vmor %vm1455, %vm1456
    %v1458 = vsel %vm1457, %v1450, %v1454
    %v1459 = vand.u32 2147483647, %v1138
    %vm1460 = vcmp.eq.f32.partialorder %v1459, 8.507059e+37
    %v1461 = vand.u32 %v1138, 2147483648
    %v1462 = vor.u32 1.1754944e-38, %v1461
    %v1463 = vsel %vm1460, %v1462, %v1458
    %v1464 = vmul.f32 1.0, %v1463
    %v1465 = vrcp.pop %v1139
    %v1466 = vmul.f32 %v1139, %v1465
    %v1467 = vsub.f32 1.0, %v1466
    %v1468 = vmul.f32 %v1465, %v1467
    %v1469 = vadd.f32 %v1465, %v1468
    %vm1470 = vweird.f32 %v1139
    %vm1471 = vweird.f32 %v1465
    %vm1472 = vmor %vm1470, %vm1471
    %v1473 = vsel %vm1472, %v1465, %v1469
    %v1474 = vand.u32 2147483647, %v1139
    %vm1475 = vcmp.eq.f32.partialorder %v1474, 8.507059e+37
    %v1476 = vand.u32 %v1139, 2147483648
    %v1477 = vor.u32 1.1754944e-38, %v1476
    %v1478 = vsel %vm1475, %v1477, %v1473
    %v1479 = vmul.f32 1.0, %v1478
    %v1480 = vrcp.pop %v1140
    %v1481 = vmul.f32 %v1140, %v1480
    %v1482 = vsub.f32 1.0, %v1481
    %v1483 = vmul.f32 %v1480, %v1482
    %v1484 = vadd.f32 %v1480, %v1483
    %vm1485 = vweird.f32 %v1140
    %vm1486 = vweird.f32 %v1480
    %vm1487 = vmor %vm1485, %vm1486
    %v1488 = vsel %vm1487, %v1480, %v1484
    %v1489 = vand.u32 2147483647, %v1140
    %vm1490 = vcmp.eq.f32.partialorder %v1489, 8.507059e+37
    %v1491 = vand.u32 %v1140, 2147483648
    %v1492 = vor.u32 1.1754944e-38, %v1491
    %v1493 = vsel %vm1490, %v1492, %v1488
    %v1494 = vmul.f32 1.0, %v1493
    %v1495 = vrcp.pop %v1141
    %v1496 = vmul.f32 %v1141, %v1495
    %v1497 = vsub.f32 1.0, %v1496
    %v1498 = vmul.f32 %v1495, %v1497
    %v1499 = vadd.f32 %v1495, %v1498
    %vm1500 = vweird.f32 %v1141
    %vm1501 = vweird.f32 %v1495
    %vm1502 = vmor %vm1500, %vm1501
    %v1503 = vsel %vm1502, %v1495, %v1499
    %v1504 = vand.u32 2147483647, %v1141
    %vm1505 = vcmp.eq.f32.partialorder %v1504, 8.507059e+37
    %v1506 = vand.u32 %v1141, 2147483648
    %v1507 = vor.u32 1.1754944e-38, %v1506
    %v1508 = vsel %vm1505, %v1507, %v1503
    %v1509 = vmul.f32 1.0, %v1508
    %v1510 = vrcp.pop %v1142
    %v1511 = vmul.f32 %v1142, %v1510
    %v1512 = vsub.f32 1.0, %v1511
    %v1513 = vmul.f32 %v1510, %v1512
    %v1514 = vadd.f32 %v1510, %v1513
    %vm1515 = vweird.f32 %v1142
    %vm1516 = vweird.f32 %v1510
    %vm1517 = vmor %vm1515, %vm1516
    %v1518 = vsel %vm1517, %v1510, %v1514
    %v1519 = vand.u32 2147483647, %v1142
    %vm1520 = vcmp.eq.f32.partialorder %v1519, 8.507059e+37
    %v1521 = vand.u32 %v1142, 2147483648
    %v1522 = vor.u32 1.1754944e-38, %v1521
    %v1523 = vsel %vm1520, %v1522, %v1518
    %v1524 = vmul.f32 1.0, %v1523
    %v1525 = vrcp.pop %v1143
    %v1526 = vmul.f32 %v1143, %v1525
    %v1527 = vsub.f32 1.0, %v1526
    %v1528 = vmul.f32 %v1525, %v1527
    %v1529 = vadd.f32 %v1525, %v1528
    %vm1530 = vweird.f32 %v1143
    %vm1531 = vweird.f32 %v1525
    %vm1532 = vmor %vm1530, %vm1531
    %v1533 = vsel %vm1532, %v1525, %v1529
    %v1534 = vand.u32 2147483647, %v1143
    %vm1535 = vcmp.eq.f32.partialorder %v1534, 8.507059e+37
    %v1536 = vand.u32 %v1143, 2147483648
    %v1537 = vor.u32 1.1754944e-38, %v1536
    %v1538 = vsel %vm1535, %v1537, %v1533
    %v1539 = vmul.f32 1.0, %v1538
    %v1540 = vrcp.pop %v1144
    %v1541 = vmul.f32 %v1144, %v1540
    %v1542 = vsub.f32 1.0, %v1541
    %v1543 = vmul.f32 %v1540, %v1542
    %v1544 = vadd.f32 %v1540, %v1543
    %vm1545 = vweird.f32 %v1144
    %vm1546 = vweird.f32 %v1540
    %vm1547 = vmor %vm1545, %vm1546
    %v1548 = vsel %vm1547, %v1540, %v1544
    %v1549 = vand.u32 2147483647, %v1144
    %vm1550 = vcmp.eq.f32.partialorder %v1549, 8.507059e+37
    %v1551 = vand.u32 %v1144, 2147483648
    %v1552 = vor.u32 1.1754944e-38, %v1551
    %v1553 = vsel %vm1550, %v1552, %v1548
    %v1554 = vmul.f32 1.0, %v1553
    %v1555 = vrcp.pop %v1145
    %v1556 = vmul.f32 %v1145, %v1555
    %v1557 = vsub.f32 1.0, %v1556
    %v1558 = vmul.f32 %v1555, %v1557
    %v1559 = vadd.f32 %v1555, %v1558
    %vm1560 = vweird.f32 %v1145
    %vm1561 = vweird.f32 %v1555
    %vm1562 = vmor %vm1560, %vm1561
    %v1563 = vsel %vm1562, %v1555, %v1559
    %v1564 = vand.u32 2147483647, %v1145
    %vm1565 = vcmp.eq.f32.partialorder %v1564, 8.507059e+37
    %v1566 = vand.u32 %v1145, 2147483648
    %v1567 = vor.u32 1.1754944e-38, %v1566
    %v1568 = vsel %vm1565, %v1567, %v1563
    %v1569 = vmul.f32 1.0, %v1568
    %v1570 = vrcp.pop %v1146
    %v1571 = vmul.f32 %v1146, %v1570
    %v1572 = vsub.f32 1.0, %v1571
    %v1573 = vmul.f32 %v1570, %v1572
    %v1574 = vadd.f32 %v1570, %v1573
    %vm1575 = vweird.f32 %v1146
    %vm1576 = vweird.f32 %v1570
    %vm1577 = vmor %vm1575, %vm1576
    %v1578 = vsel %vm1577, %v1570, %v1574
    %v1579 = vand.u32 2147483647, %v1146
    %vm1580 = vcmp.eq.f32.partialorder %v1579, 8.507059e+37
    %v1581 = vand.u32 %v1146, 2147483648
    %v1582 = vor.u32 1.1754944e-38, %v1581
    %v1583 = vsel %vm1580, %v1582, %v1578
    %v1584 = vmul.f32 1.0, %v1583
    %v1585 = vrcp.pop %v1147
    %v1586 = vmul.f32 %v1147, %v1585
    %v1587 = vsub.f32 1.0, %v1586
    %v1588 = vmul.f32 %v1585, %v1587
    %v1589 = vadd.f32 %v1585, %v1588
    %vm1590 = vweird.f32 %v1147
    %vm1591 = vweird.f32 %v1585
    %vm1592 = vmor %vm1590, %vm1591
    %v1593 = vsel %vm1592, %v1585, %v1589
    %v1594 = vand.u32 2147483647, %v1147
    %vm1595 = vcmp.eq.f32.partialorder %v1594, 8.507059e+37
    %v1596 = vand.u32 %v1147, 2147483648
    %v1597 = vor.u32 1.1754944e-38, %v1596
    %v1598 = vsel %vm1595, %v1597, %v1593
    %v1599 = vmul.f32 1.0, %v1598
    %v1600 = vrcp.pop %v1148
    %v1601 = vmul.f32 %v1148, %v1600
    %v1602 = vsub.f32 1.0, %v1601
    %v1603 = vmul.f32 %v1600, %v1602
    %v1604 = vadd.f32 %v1600, %v1603
    %vm1605 = vweird.f32 %v1148
    %vm1606 = vweird.f32 %v1600
    %vm1607 = vmor %vm1605, %vm1606
    %v1608 = vsel %vm1607, %v1600, %v1604
    %v1609 = vand.u32 2147483647, %v1148
    %vm1610 = vcmp.eq.f32.partialorder %v1609, 8.507059e+37
    %v1611 = vand.u32 %v1148, 2147483648
    %v1612 = vor.u32 1.1754944e-38, %v1611
    %v1613 = vsel %vm1610, %v1612, %v1608
    %v1614 = vmul.f32 1.0, %v1613
    %v1615 = vrcp.pop %v1149
    %v1616 = vmul.f32 %v1149, %v1615
    %v1617 = vsub.f32 1.0, %v1616
    %v1618 = vmul.f32 %v1615, %v1617
    %v1619 = vadd.f32 %v1615, %v1618
    %vm1620 = vweird.f32 %v1149
    %vm1621 = vweird.f32 %v1615
    %vm1622 = vmor %vm1620, %vm1621
    %v1623 = vsel %vm1622, %v1615, %v1619
    %v1624 = vand.u32 2147483647, %v1149
    %vm1625 = vcmp.eq.f32.partialorder %v1624, 8.507059e+37
    %v1626 = vand.u32 %v1149, 2147483648
    %v1627 = vor.u32 1.1754944e-38, %v1626
    %v1628 = vsel %vm1625, %v1627, %v1623
    %v1629 = vmul.f32 1.0, %v1628
    %v1630 = vld [vmem:[%s5] sm:$0x1]
    %v1632 = vperm.slane %v1630, 0
    %v1634 = vmul.f32 %v1164, %v1632
    %v1635 = vmul.f32 %v1179, %v1632
    %v1636 = vmul.f32 %v1194, %v1632
    %v1637 = vmul.f32 %v1209, %v1632
    %v1638 = vmul.f32 %v1224, %v1632
    %v1639 = vmul.f32 %v1239, %v1632
    %v1640 = vmul.f32 %v1254, %v1632
    %v1641 = vmul.f32 %v1269, %v1632
    %v1642 = vmul.f32 %v1284, %v1632
    %v1643 = vmul.f32 %v1299, %v1632
    %v1644 = vmul.f32 %v1314, %v1632
    %v1645 = vmul.f32 %v1329, %v1632
    %v1646 = vmul.f32 %v1344, %v1632
    %v1647 = vmul.f32 %v1359, %v1632
    %v1648 = vmul.f32 %v1374, %v1632
    %v1649 = vmul.f32 %v1389, %v1632
    %v1650 = vmul.f32 %v1404, %v1632
    %v1651 = vmul.f32 %v1419, %v1632
    %v1652 = vmul.f32 %v1434, %v1632
    %v1653 = vmul.f32 %v1449, %v1632
    %v1654 = vmul.f32 %v1464, %v1632
    %v1655 = vmul.f32 %v1479, %v1632
    %v1656 = vmul.f32 %v1494, %v1632
    %v1657 = vmul.f32 %v1509, %v1632
    %v1658 = vmul.f32 %v1524, %v1632
    %v1659 = vmul.f32 %v1539, %v1632
    %v1660 = vmul.f32 %v1554, %v1632
    %v1661 = vmul.f32 %v1569, %v1632
    %v1662 = vmul.f32 %v1584, %v1632
    %v1663 = vmul.f32 %v1599, %v1632
    %v1664 = vmul.f32 %v1614, %v1632
    %v1665 = vmul.f32 %v1629, %v1632
    %vm1666 = vcmask 523264
    %v1667 = vsel %vm1666, %v1634, 0.0
    %1668 = vadd.xlane.f32.xlu0 %v1667
    %v1669 = vpop.xlane.xlu0 %1668
    %v1670 = vsel %vm1666, %v1635, 0.0
    %1671 = vadd.xlane.f32.xlu0 %v1670
    %v1672 = vpop.xlane.xlu0 %1671
    %v1673 = vsel %vm1666, %v1636, 0.0
    %1674 = vadd.xlane.f32.xlu0 %v1673
    %v1675 = vpop.xlane.xlu0 %1674
    %v1676 = vsel %vm1666, %v1637, 0.0
    %1677 = vadd.xlane.f32.xlu0 %v1676
    %v1678 = vpop.xlane.xlu0 %1677
    %v1679 = vsel %vm1666, %v1638, 0.0
    %1680 = vadd.xlane.f32.xlu0 %v1679
    %v1681 = vpop.xlane.xlu0 %1680
    %v1682 = vsel %vm1666, %v1639, 0.0
    %1683 = vadd.xlane.f32.xlu0 %v1682
    %v1684 = vpop.xlane.xlu0 %1683
    %v1685 = vsel %vm1666, %v1640, 0.0
    %1686 = vadd.xlane.f32.xlu0 %v1685
    %v1687 = vpop.xlane.xlu0 %1686
    %v1688 = vsel %vm1666, %v1641, 0.0
    %1689 = vadd.xlane.f32.xlu0 %v1688
    %v1690 = vpop.xlane.xlu0 %1689
    %v1691 = vsel %vm1666, %v1642, 0.0
    %1692 = vadd.xlane.f32.xlu0 %v1691
    %v1693 = vpop.xlane.xlu0 %1692
    %v1694 = vsel %vm1666, %v1643, 0.0
    %1695 = vadd.xlane.f32.xlu0 %v1694
    %v1696 = vpop.xlane.xlu0 %1695
    %v1697 = vsel %vm1666, %v1644, 0.0
    %1698 = vadd.xlane.f32.xlu0 %v1697
    %v1699 = vpop.xlane.xlu0 %1698
    %v1700 = vsel %vm1666, %v1645, 0.0
    %1701 = vadd.xlane.f32.xlu0 %v1700
    %v1702 = vpop.xlane.xlu0 %1701
    %v1703 = vsel %vm1666, %v1646, 0.0
    %1704 = vadd.xlane.f32.xlu0 %v1703
    %v1705 = vpop.xlane.xlu0 %1704
    %v1706 = vsel %vm1666, %v1647, 0.0
    %1707 = vadd.xlane.f32.xlu0 %v1706
    %v1708 = vpop.xlane.xlu0 %1707
    %v1709 = vsel %vm1666, %v1648, 0.0
    %1710 = vadd.xlane.f32.xlu0 %v1709
    %v1711 = vpop.xlane.xlu0 %1710
    %v1712 = vsel %vm1666, %v1649, 0.0
    %1713 = vadd.xlane.f32.xlu0 %v1712
    %v1714 = vpop.xlane.xlu0 %1713
    %v1715 = vsel %vm1666, %v1650, 0.0
    %1716 = vadd.xlane.f32.xlu0 %v1715
    %v1717 = vpop.xlane.xlu0 %1716
    %v1718 = vsel %vm1666, %v1651, 0.0
    %1719 = vadd.xlane.f32.xlu0 %v1718
    %v1720 = vpop.xlane.xlu0 %1719
    %v1721 = vsel %vm1666, %v1652, 0.0
    %1722 = vadd.xlane.f32.xlu0 %v1721
    %v1723 = vpop.xlane.xlu0 %1722
    %v1724 = vsel %vm1666, %v1653, 0.0
    %1725 = vadd.xlane.f32.xlu0 %v1724
    %v1726 = vpop.xlane.xlu0 %1725
    %v1727 = vsel %vm1666, %v1654, 0.0
    %1728 = vadd.xlane.f32.xlu0 %v1727
    %v1729 = vpop.xlane.xlu0 %1728
    %v1730 = vsel %vm1666, %v1655, 0.0
    %1731 = vadd.xlane.f32.xlu0 %v1730
    %v1732 = vpop.xlane.xlu0 %1731
    %v1733 = vsel %vm1666, %v1656, 0.0
    %1734 = vadd.xlane.f32.xlu0 %v1733
    %v1735 = vpop.xlane.xlu0 %1734
    %v1736 = vsel %vm1666, %v1657, 0.0
    %1737 = vadd.xlane.f32.xlu0 %v1736
    %v1738 = vpop.xlane.xlu0 %1737
    %v1739 = vsel %vm1666, %v1658, 0.0
    %1740 = vadd.xlane.f32.xlu0 %v1739
    %v1741 = vpop.xlane.xlu0 %1740
    %v1742 = vsel %vm1666, %v1659, 0.0
    %1743 = vadd.xlane.f32.xlu0 %v1742
    %v1744 = vpop.xlane.xlu0 %1743
    %v1745 = vsel %vm1666, %v1660, 0.0
    %1746 = vadd.xlane.f32.xlu0 %v1745
    %v1747 = vpop.xlane.xlu0 %1746
    %v1748 = vsel %vm1666, %v1661, 0.0
    %1749 = vadd.xlane.f32.xlu0 %v1748
    %v1750 = vpop.xlane.xlu0 %1749
    %v1751 = vsel %vm1666, %v1662, 0.0
    %1752 = vadd.xlane.f32.xlu0 %v1751
    %v1753 = vpop.xlane.xlu0 %1752
    %v1754 = vsel %vm1666, %v1663, 0.0
    %1755 = vadd.xlane.f32.xlu0 %v1754
    %v1756 = vpop.xlane.xlu0 %1755
    %v1757 = vsel %vm1666, %v1664, 0.0
    %1758 = vadd.xlane.f32.xlu0 %v1757
    %v1759 = vpop.xlane.xlu0 %1758
    %v1760 = vsel %vm1666, %v1665, 0.0
    %1761 = vadd.xlane.f32.xlu0 %v1760
    %v1762 = vpop.xlane.xlu0 %1761
    %v1763 = vld [vmem:[#allocation2] sm:$0x1]
    %1765 = vset.pattern.permute.xlu0 0
    %1766 = vperm.xlu0 %1765, %v1763
    %v1767 = vpop.permute.xlu0 %1766
    %v1769 = vperm.slane %v1767, 0
    %v1770 = vadd.f32 %v1669, %v1769
    %v1771 = vadd.f32 %v1672, %v1769
    %v1772 = vadd.f32 %v1675, %v1769
    %v1773 = vadd.f32 %v1678, %v1769
    %v1774 = vadd.f32 %v1681, %v1769
    %v1775 = vadd.f32 %v1684, %v1769
    %v1776 = vadd.f32 %v1687, %v1769
    %v1777 = vadd.f32 %v1690, %v1769
    %v1778 = vadd.f32 %v1693, %v1769
    %v1779 = vadd.f32 %v1696, %v1769
    %v1780 = vadd.f32 %v1699, %v1769
    %v1781 = vadd.f32 %v1702, %v1769
    %v1782 = vadd.f32 %v1705, %v1769
    %v1783 = vadd.f32 %v1708, %v1769
    %v1784 = vadd.f32 %v1711, %v1769
    %v1785 = vadd.f32 %v1714, %v1769
    %v1786 = vadd.f32 %v1717, %v1769
    %v1787 = vadd.f32 %v1720, %v1769
    %v1788 = vadd.f32 %v1723, %v1769
    %v1789 = vadd.f32 %v1726, %v1769
    %v1790 = vadd.f32 %v1729, %v1769
    %v1791 = vadd.f32 %v1732, %v1769
    %v1792 = vadd.f32 %v1735, %v1769
    %v1793 = vadd.f32 %v1738, %v1769
    %v1794 = vadd.f32 %v1741, %v1769
    %v1795 = vadd.f32 %v1744, %v1769
    %v1796 = vadd.f32 %v1747, %v1769
    %v1797 = vadd.f32 %v1750, %v1769
    %v1798 = vadd.f32 %v1753, %v1769
    %v1799 = vadd.f32 %v1756, %v1769
    %v1800 = vadd.f32 %v1759, %v1769
    %v1801 = vadd.f32 %v1762, %v1769
    %v1802 = vxor.u32 %v1770, 2147483648
    %v1803 = vxor.u32 %v1771, 2147483648
    %v1804 = vxor.u32 %v1772, 2147483648
    %v1805 = vxor.u32 %v1773, 2147483648
    %v1806 = vxor.u32 %v1774, 2147483648
    %v1807 = vxor.u32 %v1775, 2147483648
    %v1808 = vxor.u32 %v1776, 2147483648
    %v1809 = vxor.u32 %v1777, 2147483648
    %v1810 = vxor.u32 %v1778, 2147483648
    %v1811 = vxor.u32 %v1779, 2147483648
    %v1812 = vxor.u32 %v1780, 2147483648
    %v1813 = vxor.u32 %v1781, 2147483648
    %v1814 = vxor.u32 %v1782, 2147483648
    %v1815 = vxor.u32 %v1783, 2147483648
    %v1816 = vxor.u32 %v1784, 2147483648
    %v1817 = vxor.u32 %v1785, 2147483648
    %v1818 = vxor.u32 %v1786, 2147483648
    %v1819 = vxor.u32 %v1787, 2147483648
    %v1820 = vxor.u32 %v1788, 2147483648
    %v1821 = vxor.u32 %v1789, 2147483648
    %v1822 = vxor.u32 %v1790, 2147483648
    %v1823 = vxor.u32 %v1791, 2147483648
    %v1824 = vxor.u32 %v1792, 2147483648
    %v1825 = vxor.u32 %v1793, 2147483648
    %v1826 = vxor.u32 %v1794, 2147483648
    %v1827 = vxor.u32 %v1795, 2147483648
    %v1828 = vxor.u32 %v1796, 2147483648
    %v1829 = vxor.u32 %v1797, 2147483648
    %v1830 = vxor.u32 %v1798, 2147483648
    %v1831 = vxor.u32 %v1799, 2147483648
    %v1832 = vxor.u32 %v1800, 2147483648
    %v1833 = vxor.u32 %v1801, 2147483648
    %v1834 = vmul.f32 %v1802, 1.442695
    %v1835 = vpow.pop %v1834
    %v1836 = vmul.f32 %v1803, 1.442695
    %v1837 = vpow.pop %v1836
    %v1838 = vmul.f32 %v1804, 1.442695
    %v1839 = vpow.pop %v1838
    %v1840 = vmul.f32 %v1805, 1.442695
    %v1841 = vpow.pop %v1840
    %v1842 = vmul.f32 %v1806, 1.442695
    %v1843 = vpow.pop %v1842
    %v1844 = vmul.f32 %v1807, 1.442695
    %v1845 = vpow.pop %v1844
    %v1846 = vmul.f32 %v1808, 1.442695
    %v1847 = vpow.pop %v1846
    %v1848 = vmul.f32 %v1809, 1.442695
    %v1849 = vpow.pop %v1848
    %v1850 = vmul.f32 %v1810, 1.442695
    %v1851 = vpow.pop %v1850
    %v1852 = vmul.f32 %v1811, 1.442695
    %v1853 = vpow.pop %v1852
    %v1854 = vmul.f32 %v1812, 1.442695
    %v1855 = vpow.pop %v1854
    %v1856 = vmul.f32 %v1813, 1.442695
    %v1857 = vpow.pop %v1856
    %v1858 = vmul.f32 %v1814, 1.442695
    %v1859 = vpow.pop %v1858
    %v1860 = vmul.f32 %v1815, 1.442695
    %v1861 = vpow.pop %v1860
    %v1862 = vmul.f32 %v1816, 1.442695
    %v1863 = vpow.pop %v1862
    %v1864 = vmul.f32 %v1817, 1.442695
    %v1865 = vpow.pop %v1864
    %v1866 = vmul.f32 %v1818, 1.442695
    %v1867 = vpow.pop %v1866
    %v1868 = vmul.f32 %v1819, 1.442695
    %v1869 = vpow.pop %v1868
    %v1870 = vmul.f32 %v1820, 1.442695
    %v1871 = vpow.pop %v1870
    %v1872 = vmul.f32 %v1821, 1.442695
    %v1873 = vpow.pop %v1872
    %v1874 = vmul.f32 %v1822, 1.442695
    %v1875 = vpow.pop %v1874
    %v1876 = vmul.f32 %v1823, 1.442695
    %v1877 = vpow.pop %v1876
    %v1878 = vmul.f32 %v1824, 1.442695
    %v1879 = vpow.pop %v1878
    %v1880 = vmul.f32 %v1825, 1.442695
    %v1881 = vpow.pop %v1880
    %v1882 = vmul.f32 %v1826, 1.442695
    %v1883 = vpow.pop %v1882
    %v1884 = vmul.f32 %v1827, 1.442695
    %v1885 = vpow.pop %v1884
    %v1886 = vmul.f32 %v1828, 1.442695
    %v1887 = vpow.pop %v1886
    %v1888 = vmul.f32 %v1829, 1.442695
    %v1889 = vpow.pop %v1888
    %v1890 = vmul.f32 %v1830, 1.442695
    %v1891 = vpow.pop %v1890
    %v1892 = vmul.f32 %v1831, 1.442695
    %v1893 = vpow.pop %v1892
    %v1894 = vmul.f32 %v1832, 1.442695
    %v1895 = vpow.pop %v1894
    %v1896 = vmul.f32 %v1833, 1.442695
    %v1897 = vpow.pop %v1896
    %v1898 = vadd.f32 %v1835, 1.0
    %v1899 = vadd.f32 %v1837, 1.0
    %v1900 = vadd.f32 %v1839, 1.0
    %v1901 = vadd.f32 %v1841, 1.0
    %v1902 = vadd.f32 %v1843, 1.0
    %v1903 = vadd.f32 %v1845, 1.0
    %v1904 = vadd.f32 %v1847, 1.0
    %v1905 = vadd.f32 %v1849, 1.0
    %v1906 = vadd.f32 %v1851, 1.0
    %v1907 = vadd.f32 %v1853, 1.0
    %v1908 = vadd.f32 %v1855, 1.0
    %v1909 = vadd.f32 %v1857, 1.0
    %v1910 = vadd.f32 %v1859, 1.0
    %v1911 = vadd.f32 %v1861, 1.0
    %v1912 = vadd.f32 %v1863, 1.0
    %v1913 = vadd.f32 %v1865, 1.0
    %v1914 = vadd.f32 %v1867, 1.0
    %v1915 = vadd.f32 %v1869, 1.0
    %v1916 = vadd.f32 %v1871, 1.0
    %v1917 = vadd.f32 %v1873, 1.0
    %v1918 = vadd.f32 %v1875, 1.0
    %v1919 = vadd.f32 %v1877, 1.0
    %v1920 = vadd.f32 %v1879, 1.0
    %v1921 = vadd.f32 %v1881, 1.0
    %v1922 = vadd.f32 %v1883, 1.0
    %v1923 = vadd.f32 %v1885, 1.0
    %v1924 = vadd.f32 %v1887, 1.0
    %v1925 = vadd.f32 %v1889, 1.0
    %v1926 = vadd.f32 %v1891, 1.0
    %v1927 = vadd.f32 %v1893, 1.0
    %v1928 = vadd.f32 %v1895, 1.0
    %v1929 = vadd.f32 %v1897, 1.0
    %v1930 = vrcp.pop %v1898
    %v1931 = vmul.f32 %v1898, %v1930
    %v1932 = vsub.f32 1.0, %v1931
    %v1933 = vmul.f32 %v1930, %v1932
    %v1934 = vadd.f32 %v1930, %v1933
    %vm1935 = vweird.f32 %v1898
    %vm1936 = vweird.f32 %v1930
    %vm1937 = vmor %vm1935, %vm1936
    %v1938 = vsel %vm1937, %v1930, %v1934
    %v1939 = vand.u32 2147483647, %v1898
    %vm1940 = vcmp.eq.f32.partialorder %v1939, 8.507059e+37
    %v1941 = vand.u32 %v1898, 2147483648
    %v1942 = vor.u32 1.1754944e-38, %v1941
    %v1943 = vsel %vm1940, %v1942, %v1938
    %v1944 = vmul.f32 1.0, %v1943
    %v1945 = vrcp.pop %v1899
    %v1946 = vmul.f32 %v1899, %v1945
    %v1947 = vsub.f32 1.0, %v1946
    %v1948 = vmul.f32 %v1945, %v1947
    %v1949 = vadd.f32 %v1945, %v1948
    %vm1950 = vweird.f32 %v1899
    %vm1951 = vweird.f32 %v1945
    %vm1952 = vmor %vm1950, %vm1951
    %v1953 = vsel %vm1952, %v1945, %v1949
    %v1954 = vand.u32 2147483647, %v1899
    %vm1955 = vcmp.eq.f32.partialorder %v1954, 8.507059e+37
    %v1956 = vand.u32 %v1899, 2147483648
    %v1957 = vor.u32 1.1754944e-38, %v1956
    %v1958 = vsel %vm1955, %v1957, %v1953
    %v1959 = vmul.f32 1.0, %v1958
    %v1960 = vrcp.pop %v1900
    %v1961 = vmul.f32 %v1900, %v1960
    %v1962 = vsub.f32 1.0, %v1961
    %v1963 = vmul.f32 %v1960, %v1962
    %v1964 = vadd.f32 %v1960, %v1963
    %vm1965 = vweird.f32 %v1900
    %vm1966 = vweird.f32 %v1960
    %vm1967 = vmor %vm1965, %vm1966
    %v1968 = vsel %vm1967, %v1960, %v1964
    %v1969 = vand.u32 2147483647, %v1900
    %vm1970 = vcmp.eq.f32.partialorder %v1969, 8.507059e+37
    %v1971 = vand.u32 %v1900, 2147483648
    %v1972 = vor.u32 1.1754944e-38, %v1971
    %v1973 = vsel %vm1970, %v1972, %v1968
    %v1974 = vmul.f32 1.0, %v1973
    %v1975 = vrcp.pop %v1901
    %v1976 = vmul.f32 %v1901, %v1975
    %v1977 = vsub.f32 1.0, %v1976
    %v1978 = vmul.f32 %v1975, %v1977
    %v1979 = vadd.f32 %v1975, %v1978
    %vm1980 = vweird.f32 %v1901
    %vm1981 = vweird.f32 %v1975
    %vm1982 = vmor %vm1980, %vm1981
    %v1983 = vsel %vm1982, %v1975, %v1979
    %v1984 = vand.u32 2147483647, %v1901
    %vm1985 = vcmp.eq.f32.partialorder %v1984, 8.507059e+37
    %v1986 = vand.u32 %v1901, 2147483648
    %v1987 = vor.u32 1.1754944e-38, %v1986
    %v1988 = vsel %vm1985, %v1987, %v1983
    %v1989 = vmul.f32 1.0, %v1988
    %v1990 = vrcp.pop %v1902
    %v1991 = vmul.f32 %v1902, %v1990
    %v1992 = vsub.f32 1.0, %v1991
    %v1993 = vmul.f32 %v1990, %v1992
    %v1994 = vadd.f32 %v1990, %v1993
    %vm1995 = vweird.f32 %v1902
    %vm1996 = vweird.f32 %v1990
    %vm1997 = vmor %vm1995, %vm1996
    %v1998 = vsel %vm1997, %v1990, %v1994
    %v1999 = vand.u32 2147483647, %v1902
    %vm2000 = vcmp.eq.f32.partialorder %v1999, 8.507059e+37
    %v2001 = vand.u32 %v1902, 2147483648
    %v2002 = vor.u32 1.1754944e-38, %v2001
    %v2003 = vsel %vm2000, %v2002, %v1998
    %v2004 = vmul.f32 1.0, %v2003
    %v2005 = vrcp.pop %v1903
    %v2006 = vmul.f32 %v1903, %v2005
    %v2007 = vsub.f32 1.0, %v2006
    %v2008 = vmul.f32 %v2005, %v2007
    %v2009 = vadd.f32 %v2005, %v2008
    %vm2010 = vweird.f32 %v1903
    %vm2011 = vweird.f32 %v2005
    %vm2012 = vmor %vm2010, %vm2011
    %v2013 = vsel %vm2012, %v2005, %v2009
    %v2014 = vand.u32 2147483647, %v1903
    %vm2015 = vcmp.eq.f32.partialorder %v2014, 8.507059e+37
    %v2016 = vand.u32 %v1903, 2147483648
    %v2017 = vor.u32 1.1754944e-38, %v2016
    %v2018 = vsel %vm2015, %v2017, %v2013
    %v2019 = vmul.f32 1.0, %v2018
    %v2020 = vrcp.pop %v1904
    %v2021 = vmul.f32 %v1904, %v2020
    %v2022 = vsub.f32 1.0, %v2021
    %v2023 = vmul.f32 %v2020, %v2022
    %v2024 = vadd.f32 %v2020, %v2023
    %vm2025 = vweird.f32 %v1904
    %vm2026 = vweird.f32 %v2020
    %vm2027 = vmor %vm2025, %vm2026
    %v2028 = vsel %vm2027, %v2020, %v2024
    %v2029 = vand.u32 2147483647, %v1904
    %vm2030 = vcmp.eq.f32.partialorder %v2029, 8.507059e+37
    %v2031 = vand.u32 %v1904, 2147483648
    %v2032 = vor.u32 1.1754944e-38, %v2031
    %v2033 = vsel %vm2030, %v2032, %v2028
    %v2034 = vmul.f32 1.0, %v2033
    %v2035 = vrcp.pop %v1905
    %v2036 = vmul.f32 %v1905, %v2035
    %v2037 = vsub.f32 1.0, %v2036
    %v2038 = vmul.f32 %v2035, %v2037
    %v2039 = vadd.f32 %v2035, %v2038
    %vm2040 = vweird.f32 %v1905
    %vm2041 = vweird.f32 %v2035
    %vm2042 = vmor %vm2040, %vm2041
    %v2043 = vsel %vm2042, %v2035, %v2039
    %v2044 = vand.u32 2147483647, %v1905
    %vm2045 = vcmp.eq.f32.partialorder %v2044, 8.507059e+37
    %v2046 = vand.u32 %v1905, 2147483648
    %v2047 = vor.u32 1.1754944e-38, %v2046
    %v2048 = vsel %vm2045, %v2047, %v2043
    %v2049 = vmul.f32 1.0, %v2048
    %v2050 = vrcp.pop %v1906
    %v2051 = vmul.f32 %v1906, %v2050
    %v2052 = vsub.f32 1.0, %v2051
    %v2053 = vmul.f32 %v2050, %v2052
    %v2054 = vadd.f32 %v2050, %v2053
    %vm2055 = vweird.f32 %v1906
    %vm2056 = vweird.f32 %v2050
    %vm2057 = vmor %vm2055, %vm2056
    %v2058 = vsel %vm2057, %v2050, %v2054
    %v2059 = vand.u32 2147483647, %v1906
    %vm2060 = vcmp.eq.f32.partialorder %v2059, 8.507059e+37
    %v2061 = vand.u32 %v1906, 2147483648
    %v2062 = vor.u32 1.1754944e-38, %v2061
    %v2063 = vsel %vm2060, %v2062, %v2058
    %v2064 = vmul.f32 1.0, %v2063
    %v2065 = vrcp.pop %v1907
    %v2066 = vmul.f32 %v1907, %v2065
    %v2067 = vsub.f32 1.0, %v2066
    %v2068 = vmul.f32 %v2065, %v2067
    %v2069 = vadd.f32 %v2065, %v2068
    %vm2070 = vweird.f32 %v1907
    %vm2071 = vweird.f32 %v2065
    %vm2072 = vmor %vm2070, %vm2071
    %v2073 = vsel %vm2072, %v2065, %v2069
    %v2074 = vand.u32 2147483647, %v1907
    %vm2075 = vcmp.eq.f32.partialorder %v2074, 8.507059e+37
    %v2076 = vand.u32 %v1907, 2147483648
    %v2077 = vor.u32 1.1754944e-38, %v2076
    %v2078 = vsel %vm2075, %v2077, %v2073
    %v2079 = vmul.f32 1.0, %v2078
    %v2080 = vrcp.pop %v1908
    %v2081 = vmul.f32 %v1908, %v2080
    %v2082 = vsub.f32 1.0, %v2081
    %v2083 = vmul.f32 %v2080, %v2082
    %v2084 = vadd.f32 %v2080, %v2083
    %vm2085 = vweird.f32 %v1908
    %vm2086 = vweird.f32 %v2080
    %vm2087 = vmor %vm2085, %vm2086
    %v2088 = vsel %vm2087, %v2080, %v2084
    %v2089 = vand.u32 2147483647, %v1908
    %vm2090 = vcmp.eq.f32.partialorder %v2089, 8.507059e+37
    %v2091 = vand.u32 %v1908, 2147483648
    %v2092 = vor.u32 1.1754944e-38, %v2091
    %v2093 = vsel %vm2090, %v2092, %v2088
    %v2094 = vmul.f32 1.0, %v2093
    %v2095 = vrcp.pop %v1909
    %v2096 = vmul.f32 %v1909, %v2095
    %v2097 = vsub.f32 1.0, %v2096
    %v2098 = vmul.f32 %v2095, %v2097
    %v2099 = vadd.f32 %v2095, %v2098
    %vm2100 = vweird.f32 %v1909
    %vm2101 = vweird.f32 %v2095
    %vm2102 = vmor %vm2100, %vm2101
    %v2103 = vsel %vm2102, %v2095, %v2099
    %v2104 = vand.u32 2147483647, %v1909
    %vm2105 = vcmp.eq.f32.partialorder %v2104, 8.507059e+37
    %v2106 = vand.u32 %v1909, 2147483648
    %v2107 = vor.u32 1.1754944e-38, %v2106
    %v2108 = vsel %vm2105, %v2107, %v2103
    %v2109 = vmul.f32 1.0, %v2108
    %v2110 = vrcp.pop %v1910
    %v2111 = vmul.f32 %v1910, %v2110
    %v2112 = vsub.f32 1.0, %v2111
    %v2113 = vmul.f32 %v2110, %v2112
    %v2114 = vadd.f32 %v2110, %v2113
    %vm2115 = vweird.f32 %v1910
    %vm2116 = vweird.f32 %v2110
    %vm2117 = vmor %vm2115, %vm2116
    %v2118 = vsel %vm2117, %v2110, %v2114
    %v2119 = vand.u32 2147483647, %v1910
    %vm2120 = vcmp.eq.f32.partialorder %v2119, 8.507059e+37
    %v2121 = vand.u32 %v1910, 2147483648
    %v2122 = vor.u32 1.1754944e-38, %v2121
    %v2123 = vsel %vm2120, %v2122, %v2118
    %v2124 = vmul.f32 1.0, %v2123
    %v2125 = vrcp.pop %v1911
    %v2126 = vmul.f32 %v1911, %v2125
    %v2127 = vsub.f32 1.0, %v2126
    %v2128 = vmul.f32 %v2125, %v2127
    %v2129 = vadd.f32 %v2125, %v2128
    %vm2130 = vweird.f32 %v1911
    %vm2131 = vweird.f32 %v2125
    %vm2132 = vmor %vm2130, %vm2131
    %v2133 = vsel %vm2132, %v2125, %v2129
    %v2134 = vand.u32 2147483647, %v1911
    %vm2135 = vcmp.eq.f32.partialorder %v2134, 8.507059e+37
    %v2136 = vand.u32 %v1911, 2147483648
    %v2137 = vor.u32 1.1754944e-38, %v2136
    %v2138 = vsel %vm2135, %v2137, %v2133
    %v2139 = vmul.f32 1.0, %v2138
    %v2140 = vrcp.pop %v1912
    %v2141 = vmul.f32 %v1912, %v2140
    %v2142 = vsub.f32 1.0, %v2141
    %v2143 = vmul.f32 %v2140, %v2142
    %v2144 = vadd.f32 %v2140, %v2143
    %vm2145 = vweird.f32 %v1912
    %vm2146 = vweird.f32 %v2140
    %vm2147 = vmor %vm2145, %vm2146
    %v2148 = vsel %vm2147, %v2140, %v2144
    %v2149 = vand.u32 2147483647, %v1912
    %vm2150 = vcmp.eq.f32.partialorder %v2149, 8.507059e+37
    %v2151 = vand.u32 %v1912, 2147483648
    %v2152 = vor.u32 1.1754944e-38, %v2151
    %v2153 = vsel %vm2150, %v2152, %v2148
    %v2154 = vmul.f32 1.0, %v2153
    %v2155 = vrcp.pop %v1913
    %v2156 = vmul.f32 %v1913, %v2155
    %v2157 = vsub.f32 1.0, %v2156
    %v2158 = vmul.f32 %v2155, %v2157
    %v2159 = vadd.f32 %v2155, %v2158
    %vm2160 = vweird.f32 %v1913
    %vm2161 = vweird.f32 %v2155
    %vm2162 = vmor %vm2160, %vm2161
    %v2163 = vsel %vm2162, %v2155, %v2159
    %v2164 = vand.u32 2147483647, %v1913
    %vm2165 = vcmp.eq.f32.partialorder %v2164, 8.507059e+37
    %v2166 = vand.u32 %v1913, 2147483648
    %v2167 = vor.u32 1.1754944e-38, %v2166
    %v2168 = vsel %vm2165, %v2167, %v2163
    %v2169 = vmul.f32 1.0, %v2168
    %v2170 = vrcp.pop %v1914
    %v2171 = vmul.f32 %v1914, %v2170
    %v2172 = vsub.f32 1.0, %v2171
    %v2173 = vmul.f32 %v2170, %v2172
    %v2174 = vadd.f32 %v2170, %v2173
    %vm2175 = vweird.f32 %v1914
    %vm2176 = vweird.f32 %v2170
    %vm2177 = vmor %vm2175, %vm2176
    %v2178 = vsel %vm2177, %v2170, %v2174
    %v2179 = vand.u32 2147483647, %v1914
    %vm2180 = vcmp.eq.f32.partialorder %v2179, 8.507059e+37
    %v2181 = vand.u32 %v1914, 2147483648
    %v2182 = vor.u32 1.1754944e-38, %v2181
    %v2183 = vsel %vm2180, %v2182, %v2178
    %v2184 = vmul.f32 1.0, %v2183
    %v2185 = vrcp.pop %v1915
    %v2186 = vmul.f32 %v1915, %v2185
    %v2187 = vsub.f32 1.0, %v2186
    %v2188 = vmul.f32 %v2185, %v2187
    %v2189 = vadd.f32 %v2185, %v2188
    %vm2190 = vweird.f32 %v1915
    %vm2191 = vweird.f32 %v2185
    %vm2192 = vmor %vm2190, %vm2191
    %v2193 = vsel %vm2192, %v2185, %v2189
    %v2194 = vand.u32 2147483647, %v1915
    %vm2195 = vcmp.eq.f32.partialorder %v2194, 8.507059e+37
    %v2196 = vand.u32 %v1915, 2147483648
    %v2197 = vor.u32 1.1754944e-38, %v2196
    %v2198 = vsel %vm2195, %v2197, %v2193
    %v2199 = vmul.f32 1.0, %v2198
    %v2200 = vrcp.pop %v1916
    %v2201 = vmul.f32 %v1916, %v2200
    %v2202 = vsub.f32 1.0, %v2201
    %v2203 = vmul.f32 %v2200, %v2202
    %v2204 = vadd.f32 %v2200, %v2203
    %vm2205 = vweird.f32 %v1916
    %vm2206 = vweird.f32 %v2200
    %vm2207 = vmor %vm2205, %vm2206
    %v2208 = vsel %vm2207, %v2200, %v2204
    %v2209 = vand.u32 2147483647, %v1916
    %vm2210 = vcmp.eq.f32.partialorder %v2209, 8.507059e+37
    %v2211 = vand.u32 %v1916, 2147483648
    %v2212 = vor.u32 1.1754944e-38, %v2211
    %v2213 = vsel %vm2210, %v2212, %v2208
    %v2214 = vmul.f32 1.0, %v2213
    %v2215 = vrcp.pop %v1917
    %v2216 = vmul.f32 %v1917, %v2215
    %v2217 = vsub.f32 1.0, %v2216
    %v2218 = vmul.f32 %v2215, %v2217
    %v2219 = vadd.f32 %v2215, %v2218
    %vm2220 = vweird.f32 %v1917
    %vm2221 = vweird.f32 %v2215
    %vm2222 = vmor %vm2220, %vm2221
    %v2223 = vsel %vm2222, %v2215, %v2219
    %v2224 = vand.u32 2147483647, %v1917
    %vm2225 = vcmp.eq.f32.partialorder %v2224, 8.507059e+37
    %v2226 = vand.u32 %v1917, 2147483648
    %v2227 = vor.u32 1.1754944e-38, %v2226
    %v2228 = vsel %vm2225, %v2227, %v2223
    %v2229 = vmul.f32 1.0, %v2228
    %v2230 = vrcp.pop %v1918
    %v2231 = vmul.f32 %v1918, %v2230
    %v2232 = vsub.f32 1.0, %v2231
    %v2233 = vmul.f32 %v2230, %v2232
    %v2234 = vadd.f32 %v2230, %v2233
    %vm2235 = vweird.f32 %v1918
    %vm2236 = vweird.f32 %v2230
    %vm2237 = vmor %vm2235, %vm2236
    %v2238 = vsel %vm2237, %v2230, %v2234
    %v2239 = vand.u32 2147483647, %v1918
    %vm2240 = vcmp.eq.f32.partialorder %v2239, 8.507059e+37
    %v2241 = vand.u32 %v1918, 2147483648
    %v2242 = vor.u32 1.1754944e-38, %v2241
    %v2243 = vsel %vm2240, %v2242, %v2238
    %v2244 = vmul.f32 1.0, %v2243
    %v2245 = vrcp.pop %v1919
    %v2246 = vmul.f32 %v1919, %v2245
    %v2247 = vsub.f32 1.0, %v2246
    %v2248 = vmul.f32 %v2245, %v2247
    %v2249 = vadd.f32 %v2245, %v2248
    %vm2250 = vweird.f32 %v1919
    %vm2251 = vweird.f32 %v2245
    %vm2252 = vmor %vm2250, %vm2251
    %v2253 = vsel %vm2252, %v2245, %v2249
    %v2254 = vand.u32 2147483647, %v1919
    %vm2255 = vcmp.eq.f32.partialorder %v2254, 8.507059e+37
    %v2256 = vand.u32 %v1919, 2147483648
    %v2257 = vor.u32 1.1754944e-38, %v2256
    %v2258 = vsel %vm2255, %v2257, %v2253
    %v2259 = vmul.f32 1.0, %v2258
    %v2260 = vrcp.pop %v1920
    %v2261 = vmul.f32 %v1920, %v2260
    %v2262 = vsub.f32 1.0, %v2261
    %v2263 = vmul.f32 %v2260, %v2262
    %v2264 = vadd.f32 %v2260, %v2263
    %vm2265 = vweird.f32 %v1920
    %vm2266 = vweird.f32 %v2260
    %vm2267 = vmor %vm2265, %vm2266
    %v2268 = vsel %vm2267, %v2260, %v2264
    %v2269 = vand.u32 2147483647, %v1920
    %vm2270 = vcmp.eq.f32.partialorder %v2269, 8.507059e+37
    %v2271 = vand.u32 %v1920, 2147483648
    %v2272 = vor.u32 1.1754944e-38, %v2271
    %v2273 = vsel %vm2270, %v2272, %v2268
    %v2274 = vmul.f32 1.0, %v2273
    %v2275 = vrcp.pop %v1921
    %v2276 = vmul.f32 %v1921, %v2275
    %v2277 = vsub.f32 1.0, %v2276
    %v2278 = vmul.f32 %v2275, %v2277
    %v2279 = vadd.f32 %v2275, %v2278
    %vm2280 = vweird.f32 %v1921
    %vm2281 = vweird.f32 %v2275
    %vm2282 = vmor %vm2280, %vm2281
    %v2283 = vsel %vm2282, %v2275, %v2279
    %v2284 = vand.u32 2147483647, %v1921
    %vm2285 = vcmp.eq.f32.partialorder %v2284, 8.507059e+37
    %v2286 = vand.u32 %v1921, 2147483648
    %v2287 = vor.u32 1.1754944e-38, %v2286
    %v2288 = vsel %vm2285, %v2287, %v2283
    %v2289 = vmul.f32 1.0, %v2288
    %v2290 = vrcp.pop %v1922
    %v2291 = vmul.f32 %v1922, %v2290
    %v2292 = vsub.f32 1.0, %v2291
    %v2293 = vmul.f32 %v2290, %v2292
    %v2294 = vadd.f32 %v2290, %v2293
    %vm2295 = vweird.f32 %v1922
    %vm2296 = vweird.f32 %v2290
    %vm2297 = vmor %vm2295, %vm2296
    %v2298 = vsel %vm2297, %v2290, %v2294
    %v2299 = vand.u32 2147483647, %v1922
    %vm2300 = vcmp.eq.f32.partialorder %v2299, 8.507059e+37
    %v2301 = vand.u32 %v1922, 2147483648
    %v2302 = vor.u32 1.1754944e-38, %v2301
    %v2303 = vsel %vm2300, %v2302, %v2298
    %v2304 = vmul.f32 1.0, %v2303
    %v2305 = vrcp.pop %v1923
    %v2306 = vmul.f32 %v1923, %v2305
    %v2307 = vsub.f32 1.0, %v2306
    %v2308 = vmul.f32 %v2305, %v2307
    %v2309 = vadd.f32 %v2305, %v2308
    %vm2310 = vweird.f32 %v1923
    %vm2311 = vweird.f32 %v2305
    %vm2312 = vmor %vm2310, %vm2311
    %v2313 = vsel %vm2312, %v2305, %v2309
    %v2314 = vand.u32 2147483647, %v1923
    %vm2315 = vcmp.eq.f32.partialorder %v2314, 8.507059e+37
    %v2316 = vand.u32 %v1923, 2147483648
    %v2317 = vor.u32 1.1754944e-38, %v2316
    %v2318 = vsel %vm2315, %v2317, %v2313
    %v2319 = vmul.f32 1.0, %v2318
    %v2320 = vrcp.pop %v1924
    %v2321 = vmul.f32 %v1924, %v2320
    %v2322 = vsub.f32 1.0, %v2321
    %v2323 = vmul.f32 %v2320, %v2322
    %v2324 = vadd.f32 %v2320, %v2323
    %vm2325 = vweird.f32 %v1924
    %vm2326 = vweird.f32 %v2320
    %vm2327 = vmor %vm2325, %vm2326
    %v2328 = vsel %vm2327, %v2320, %v2324
    %v2329 = vand.u32 2147483647, %v1924
    %vm2330 = vcmp.eq.f32.partialorder %v2329, 8.507059e+37
    %v2331 = vand.u32 %v1924, 2147483648
    %v2332 = vor.u32 1.1754944e-38, %v2331
    %v2333 = vsel %vm2330, %v2332, %v2328
    %v2334 = vmul.f32 1.0, %v2333
    %v2335 = vrcp.pop %v1925
    %v2336 = vmul.f32 %v1925, %v2335
    %v2337 = vsub.f32 1.0, %v2336
    %v2338 = vmul.f32 %v2335, %v2337
    %v2339 = vadd.f32 %v2335, %v2338
    %vm2340 = vweird.f32 %v1925
    %vm2341 = vweird.f32 %v2335
    %vm2342 = vmor %vm2340, %vm2341
    %v2343 = vsel %vm2342, %v2335, %v2339
    %v2344 = vand.u32 2147483647, %v1925
    %vm2345 = vcmp.eq.f32.partialorder %v2344, 8.507059e+37
    %v2346 = vand.u32 %v1925, 2147483648
    %v2347 = vor.u32 1.1754944e-38, %v2346
    %v2348 = vsel %vm2345, %v2347, %v2343
    %v2349 = vmul.f32 1.0, %v2348
    %v2350 = vrcp.pop %v1926
    %v2351 = vmul.f32 %v1926, %v2350
    %v2352 = vsub.f32 1.0, %v2351
    %v2353 = vmul.f32 %v2350, %v2352
    %v2354 = vadd.f32 %v2350, %v2353
    %vm2355 = vweird.f32 %v1926
    %vm2356 = vweird.f32 %v2350
    %vm2357 = vmor %vm2355, %vm2356
    %v2358 = vsel %vm2357, %v2350, %v2354
    %v2359 = vand.u32 2147483647, %v1926
    %vm2360 = vcmp.eq.f32.partialorder %v2359, 8.507059e+37
    %v2361 = vand.u32 %v1926, 2147483648
    %v2362 = vor.u32 1.1754944e-38, %v2361
    %v2363 = vsel %vm2360, %v2362, %v2358
    %v2364 = vmul.f32 1.0, %v2363
    %v2365 = vrcp.pop %v1927
    %v2366 = vmul.f32 %v1927, %v2365
    %v2367 = vsub.f32 1.0, %v2366
    %v2368 = vmul.f32 %v2365, %v2367
    %v2369 = vadd.f32 %v2365, %v2368
    %vm2370 = vweird.f32 %v1927
    %vm2371 = vweird.f32 %v2365
    %vm2372 = vmor %vm2370, %vm2371
    %v2373 = vsel %vm2372, %v2365, %v2369
    %v2374 = vand.u32 2147483647, %v1927
    %vm2375 = vcmp.eq.f32.partialorder %v2374, 8.507059e+37
    %v2376 = vand.u32 %v1927, 2147483648
    %v2377 = vor.u32 1.1754944e-38, %v2376
    %v2378 = vsel %vm2375, %v2377, %v2373
    %v2379 = vmul.f32 1.0, %v2378
    %v2380 = vrcp.pop %v1928
    %v2381 = vmul.f32 %v1928, %v2380
    %v2382 = vsub.f32 1.0, %v2381
    %v2383 = vmul.f32 %v2380, %v2382
    %v2384 = vadd.f32 %v2380, %v2383
    %vm2385 = vweird.f32 %v1928
    %vm2386 = vweird.f32 %v2380
    %vm2387 = vmor %vm2385, %vm2386
    %v2388 = vsel %vm2387, %v2380, %v2384
    %v2389 = vand.u32 2147483647, %v1928
    %vm2390 = vcmp.eq.f32.partialorder %v2389, 8.507059e+37
    %v2391 = vand.u32 %v1928, 2147483648
    %v2392 = vor.u32 1.1754944e-38, %v2391
    %v2393 = vsel %vm2390, %v2392, %v2388
    %v2394 = vmul.f32 1.0, %v2393
    %v2395 = vrcp.pop %v1929
    %v2396 = vmul.f32 %v1929, %v2395
    %v2397 = vsub.f32 1.0, %v2396
    %v2398 = vmul.f32 %v2395, %v2397
    %v2399 = vadd.f32 %v2395, %v2398
    %vm2400 = vweird.f32 %v1929
    %vm2401 = vweird.f32 %v2395
    %vm2402 = vmor %vm2400, %vm2401
    %v2403 = vsel %vm2402, %v2395, %v2399
    %v2404 = vand.u32 2147483647, %v1929
    %vm2405 = vcmp.eq.f32.partialorder %v2404, 8.507059e+37
    %v2406 = vand.u32 %v1929, 2147483648
    %v2407 = vor.u32 1.1754944e-38, %v2406
    %v2408 = vsel %vm2405, %v2407, %v2403
    %v2409 = vmul.f32 1.0, %v2408
    %v2442 = vperm.slane %v1944, 0
    %v2443 = vperm.slane %v1944, 1
    %v2444 = vperm.slane %v1944, 2
    %v2445 = vperm.slane %v1944, 3
    %v2446 = vperm.slane %v1944, 4
    %v2447 = vperm.slane %v1944, 5
    %v2448 = vperm.slane %v1944, 6
    %v2449 = vperm.slane %v1944, 7
    %v2450 = vperm.slane %v1959, 0
    %v2451 = vperm.slane %v1959, 1
    %v2452 = vperm.slane %v1959, 2
    %v2453 = vperm.slane %v1959, 3
    %v2454 = vperm.slane %v1959, 4
    %v2455 = vperm.slane %v1959, 5
    %v2456 = vperm.slane %v1959, 6
    %v2457 = vperm.slane %v1959, 7
    %v2458 = vperm.slane %v1974, 0
    %v2459 = vperm.slane %v1974, 1
    %v2460 = vperm.slane %v1974, 2
    %v2461 = vperm.slane %v1974, 3
    %v2462 = vperm.slane %v1974, 4
    %v2463 = vperm.slane %v1974, 5
    %v2464 = vperm.slane %v1974, 6
    %v2465 = vperm.slane %v1974, 7
    %v2466 = vperm.slane %v1989, 0
    %v2467 = vperm.slane %v1989, 1
    %v2468 = vperm.slane %v1989, 2
    %v2469 = vperm.slane %v1989, 3
    %v2470 = vperm.slane %v1989, 4
    %v2471 = vperm.slane %v1989, 5
    %v2472 = vperm.slane %v1989, 6
    %v2473 = vperm.slane %v1989, 7
    %v2474 = vperm.slane %v2004, 0
    %v2475 = vperm.slane %v2004, 1
    %v2476 = vperm.slane %v2004, 2
    %v2477 = vperm.slane %v2004, 3
    %v2478 = vperm.slane %v2004, 4
    %v2479 = vperm.slane %v2004, 5
    %v2480 = vperm.slane %v2004, 6
    %v2481 = vperm.slane %v2004, 7
    %v2482 = vperm.slane %v2019, 0
    %v2483 = vperm.slane %v2019, 1
    %v2484 = vperm.slane %v2019, 2
    %v2485 = vperm.slane %v2019, 3
    %v2486 = vperm.slane %v2019, 4
    %v2487 = vperm.slane %v2019, 5
    %v2488 = vperm.slane %v2019, 6
    %v2489 = vperm.slane %v2019, 7
    %v2490 = vperm.slane %v2034, 0
    %v2491 = vperm.slane %v2034, 1
    %v2492 = vperm.slane %v2034, 2
    %v2493 = vperm.slane %v2034, 3
    %v2494 = vperm.slane %v2034, 4
    %v2495 = vperm.slane %v2034, 5
    %v2496 = vperm.slane %v2034, 6
    %v2497 = vperm.slane %v2034, 7
    %v2498 = vperm.slane %v2049, 0
    %v2499 = vperm.slane %v2049, 1
    %v2500 = vperm.slane %v2049, 2
    %v2501 = vperm.slane %v2049, 3
    %v2502 = vperm.slane %v2049, 4
    %v2503 = vperm.slane %v2049, 5
    %v2504 = vperm.slane %v2049, 6
    %v2505 = vperm.slane %v2049, 7
    %v2506 = vperm.slane %v2064, 0
    %v2507 = vperm.slane %v2064, 1
    %v2508 = vperm.slane %v2064, 2
    %v2509 = vperm.slane %v2064, 3
    %v2510 = vperm.slane %v2064, 4
    %v2511 = vperm.slane %v2064, 5
    %v2512 = vperm.slane %v2064, 6
    %v2513 = vperm.slane %v2064, 7
    %v2514 = vperm.slane %v2079, 0
    %v2515 = vperm.slane %v2079, 1
    %v2516 = vperm.slane %v2079, 2
    %v2517 = vperm.slane %v2079, 3
    %v2518 = vperm.slane %v2079, 4
    %v2519 = vperm.slane %v2079, 5
    %v2520 = vperm.slane %v2079, 6
    %v2521 = vperm.slane %v2079, 7
    %v2522 = vperm.slane %v2094, 0
    %v2523 = vperm.slane %v2094, 1
    %v2524 = vperm.slane %v2094, 2
    %v2525 = vperm.slane %v2094, 3
    %v2526 = vperm.slane %v2094, 4
    %v2527 = vperm.slane %v2094, 5
    %v2528 = vperm.slane %v2094, 6
    %v2529 = vperm.slane %v2094, 7
    %v2530 = vperm.slane %v2109, 0
    %v2531 = vperm.slane %v2109, 1
    %v2532 = vperm.slane %v2109, 2
    %v2533 = vperm.slane %v2109, 3
    %v2534 = vperm.slane %v2109, 4
    %v2535 = vperm.slane %v2109, 5
    %v2536 = vperm.slane %v2109, 6
    %v2537 = vperm.slane %v2109, 7
    %v2538 = vperm.slane %v2124, 0
    %v2539 = vperm.slane %v2124, 1
    %v2540 = vperm.slane %v2124, 2
    %v2541 = vperm.slane %v2124, 3
    %v2542 = vperm.slane %v2124, 4
    %v2543 = vperm.slane %v2124, 5
    %v2544 = vperm.slane %v2124, 6
    %v2545 = vperm.slane %v2124, 7
    %v2546 = vperm.slane %v2139, 0
    %v2547 = vperm.slane %v2139, 1
    %v2548 = vperm.slane %v2139, 2
    %v2549 = vperm.slane %v2139, 3
    %v2550 = vperm.slane %v2139, 4
    %v2551 = vperm.slane %v2139, 5
    %v2552 = vperm.slane %v2139, 6
    %v2553 = vperm.slane %v2139, 7
    %v2554 = vperm.slane %v2154, 0
    %v2555 = vperm.slane %v2154, 1
    %v2556 = vperm.slane %v2154, 2
    %v2557 = vperm.slane %v2154, 3
    %v2558 = vperm.slane %v2154, 4
    %v2559 = vperm.slane %v2154, 5
    %v2560 = vperm.slane %v2154, 6
    %v2561 = vperm.slane %v2154, 7
    %v2562 = vperm.slane %v2169, 0
    %v2563 = vperm.slane %v2169, 1
    %v2564 = vperm.slane %v2169, 2
    %v2565 = vperm.slane %v2169, 3
    %v2566 = vperm.slane %v2169, 4
    %v2567 = vperm.slane %v2169, 5
    %v2568 = vperm.slane %v2169, 6
    %v2569 = vperm.slane %v2169, 7
    %v2570 = vperm.slane %v2184, 0
    %v2571 = vperm.slane %v2184, 1
    %v2572 = vperm.slane %v2184, 2
    %v2573 = vperm.slane %v2184, 3
    %v2574 = vperm.slane %v2184, 4
    %v2575 = vperm.slane %v2184, 5
    %v2576 = vperm.slane %v2184, 6
    %v2577 = vperm.slane %v2184, 7
    %v2578 = vperm.slane %v2199, 0
    %v2579 = vperm.slane %v2199, 1
    %v2580 = vperm.slane %v2199, 2
    %v2581 = vperm.slane %v2199, 3
    %v2582 = vperm.slane %v2199, 4
    %v2583 = vperm.slane %v2199, 5
    %v2584 = vperm.slane %v2199, 6
    %v2585 = vperm.slane %v2199, 7
    %v2586 = vperm.slane %v2214, 0
    %v2587 = vperm.slane %v2214, 1
    %v2588 = vperm.slane %v2214, 2
    %v2589 = vperm.slane %v2214, 3
    %v2590 = vperm.slane %v2214, 4
    %v2591 = vperm.slane %v2214, 5
    %v2592 = vperm.slane %v2214, 6
    %v2593 = vperm.slane %v2214, 7
    %v2594 = vperm.slane %v2229, 0
    %v2595 = vperm.slane %v2229, 1
    %v2596 = vperm.slane %v2229, 2
    %v2597 = vperm.slane %v2229, 3
    %v2598 = vperm.slane %v2229, 4
    %v2599 = vperm.slane %v2229, 5
    %v2600 = vperm.slane %v2229, 6
    %v2601 = vperm.slane %v2229, 7
    %v2602 = vperm.slane %v2244, 0
    %v2603 = vperm.slane %v2244, 1
    %v2604 = vperm.slane %v2244, 2
    %v2605 = vperm.slane %v2244, 3
    %v2606 = vperm.slane %v2244, 4
    %v2607 = vperm.slane %v2244, 5
    %v2608 = vperm.slane %v2244, 6
    %v2609 = vperm.slane %v2244, 7
    %v2610 = vperm.slane %v2259, 0
    %v2611 = vperm.slane %v2259, 1
    %v2612 = vperm.slane %v2259, 2
    %v2613 = vperm.slane %v2259, 3
    %v2614 = vperm.slane %v2259, 4
    %v2615 = vperm.slane %v2259, 5
    %v2616 = vperm.slane %v2259, 6
    %v2617 = vperm.slane %v2259, 7
    %v2618 = vperm.slane %v2274, 0
    %v2619 = vperm.slane %v2274, 1
    %v2620 = vperm.slane %v2274, 2
    %v2621 = vperm.slane %v2274, 3
    %v2622 = vperm.slane %v2274, 4
    %v2623 = vperm.slane %v2274, 5
    %v2624 = vperm.slane %v2274, 6
    %v2625 = vperm.slane %v2274, 7
    %v2626 = vperm.slane %v2289, 0
    %v2627 = vperm.slane %v2289, 1
    %v2628 = vperm.slane %v2289, 2
    %v2629 = vperm.slane %v2289, 3
    %v2630 = vperm.slane %v2289, 4
    %v2631 = vperm.slane %v2289, 5
    %v2632 = vperm.slane %v2289, 6
    %v2633 = vperm.slane %v2289, 7
    %v2634 = vperm.slane %v2304, 0
    %v2635 = vperm.slane %v2304, 1
    %v2636 = vperm.slane %v2304, 2
    %v2637 = vperm.slane %v2304, 3
    %v2638 = vperm.slane %v2304, 4
    %v2639 = vperm.slane %v2304, 5
    %v2640 = vperm.slane %v2304, 6
    %v2641 = vperm.slane %v2304, 7
    %v2642 = vperm.slane %v2319, 0
    %v2643 = vperm.slane %v2319, 1
    %v2644 = vperm.slane %v2319, 2
    %v2645 = vperm.slane %v2319, 3
    %v2646 = vperm.slane %v2319, 4
    %v2647 = vperm.slane %v2319, 5
    %v2648 = vperm.slane %v2319, 6
    %v2649 = vperm.slane %v2319, 7
    %v2650 = vperm.slane %v2334, 0
    %v2651 = vperm.slane %v2334, 1
    %v2652 = vperm.slane %v2334, 2
    %v2653 = vperm.slane %v2334, 3
    %v2654 = vperm.slane %v2334, 4
    %v2655 = vperm.slane %v2334, 5
    %v2656 = vperm.slane %v2334, 6
    %v2657 = vperm.slane %v2334, 7
    %v2658 = vperm.slane %v2349, 0
    %v2659 = vperm.slane %v2349, 1
    %v2660 = vperm.slane %v2349, 2
    %v2661 = vperm.slane %v2349, 3
    %v2662 = vperm.slane %v2349, 4
    %v2663 = vperm.slane %v2349, 5
    %v2664 = vperm.slane %v2349, 6
    %v2665 = vperm.slane %v2349, 7
    %v2666 = vperm.slane %v2364, 0
    %v2667 = vperm.slane %v2364, 1
    %v2668 = vperm.slane %v2364, 2
    %v2669 = vperm.slane %v2364, 3
    %v2670 = vperm.slane %v2364, 4
    %v2671 = vperm.slane %v2364, 5
    %v2672 = vperm.slane %v2364, 6
    %v2673 = vperm.slane %v2364, 7
    %v2674 = vperm.slane %v2379, 0
    %v2675 = vperm.slane %v2379, 1
    %v2676 = vperm.slane %v2379, 2
    %v2677 = vperm.slane %v2379, 3
    %v2678 = vperm.slane %v2379, 4
    %v2679 = vperm.slane %v2379, 5
    %v2680 = vperm.slane %v2379, 6
    %v2681 = vperm.slane %v2379, 7
    %v2682 = vperm.slane %v2394, 0
    %v2683 = vperm.slane %v2394, 1
    %v2684 = vperm.slane %v2394, 2
    %v2685 = vperm.slane %v2394, 3
    %v2686 = vperm.slane %v2394, 4
    %v2687 = vperm.slane %v2394, 5
    %v2688 = vperm.slane %v2394, 6
    %v2689 = vperm.slane %v2394, 7
    %v2690 = vperm.slane %v2409, 0
    %v2691 = vperm.slane %v2409, 1
    %v2692 = vperm.slane %v2409, 2
    %v2693 = vperm.slane %v2409, 3
    %v2694 = vperm.slane %v2409, 4
    %v2695 = vperm.slane %v2409, 5
    %v2696 = vperm.slane %v2409, 6
    %v2697 = vperm.slane %v2409, 7
    %2698 = vst [vmem:[#allocation1] ss:$9 sm:$0xff] %v2442
    %s2699 = scalar_lea.vmem [#allocation1], 1
    %2700 = vst [vmem:[%s2699] ss:$9 sm:$0xff] %v2443
    %s2701 = scalar_lea.vmem [#allocation1], 2
    %2702 = vst [vmem:[%s2701] ss:$9 sm:$0xff] %v2444
    %s2703 = scalar_lea.vmem [#allocation1], 3
    %2704 = vst [vmem:[%s2703] ss:$9 sm:$0xff] %v2445
    %s2705 = scalar_lea.vmem [#allocation1], 4
    %2706 = vst [vmem:[%s2705] ss:$9 sm:$0xff] %v2446
    %s2707 = scalar_lea.vmem [#allocation1], 5
    %2708 = vst [vmem:[%s2707] ss:$9 sm:$0xff] %v2447
    %s2709 = scalar_lea.vmem [#allocation1], 6
    %2710 = vst [vmem:[%s2709] ss:$9 sm:$0xff] %v2448
    %s2711 = scalar_lea.vmem [#allocation1], 7
    %2712 = vst [vmem:[%s2711] ss:$9 sm:$0xff] %v2449
    %v2713 = vld [vmem:[#allocation1] sm:$0xff]
    %2714 = vst [vmem:[#allocation1] ss:$9 sm:$0xff] %v2450
    %2715 = vst [vmem:[%s2699] ss:$9 sm:$0xff] %v2451
    %2716 = vst [vmem:[%s2701] ss:$9 sm:$0xff] %v2452
    %2717 = vst [vmem:[%s2703] ss:$9 sm:$0xff] %v2453
    %2718 = vst [vmem:[%s2705] ss:$9 sm:$0xff] %v2454
    %2719 = vst [vmem:[%s2707] ss:$9 sm:$0xff] %v2455
    %2720 = vst [vmem:[%s2709] ss:$9 sm:$0xff] %v2456
    %2721 = vst [vmem:[%s2711] ss:$9 sm:$0xff] %v2457
    %v2722 = vld [vmem:[#allocation1] sm:$0xff]
    %2723 = vst [vmem:[#allocation1] ss:$9 sm:$0xff] %v2458
    %2724 = vst [vmem:[%s2699] ss:$9 sm:$0xff] %v2459
    %2725 = vst [vmem:[%s2701] ss:$9 sm:$0xff] %v2460
    %2726 = vst [vmem:[%s2703] ss:$9 sm:$0xff] %v2461
    %2727 = vst [vmem:[%s2705] ss:$9 sm:$0xff] %v2462
    %2728 = vst [vmem:[%s2707] ss:$9 sm:$0xff] %v2463
    %2729 = vst [vmem:[%s2709] ss:$9 sm:$0xff] %v2464
    %2730 = vst [vmem:[%s2711] ss:$9 sm:$0xff] %v2465
    %v2731 = vld [vmem:[#allocation1] sm:$0xff]
    %2732 = vst [vmem:[#allocation1] ss:$9 sm:$0xff] %v2466
    %2733 = vst [vmem:[%s2699] ss:$9 sm:$0xff] %v2467
    %2734 = vst [vmem:[%s2701] ss:$9 sm:$0xff] %v2468
    %2735 = vst [vmem:[%s2703] ss:$9 sm:$0xff] %v2469
    %2736 = vst [vmem:[%s2705] ss:$9 sm:$0xff] %v2470
    %2737 = vst [vmem:[%s2707] ss:$9 sm:$0xff] %v2471
    %2738 = vst [vmem:[%s2709] ss:$9 sm:$0xff] %v2472
    %2739 = vst [vmem:[%s2711] ss:$9 sm:$0xff] %v2473
    %v2740 = vld [vmem:[#allocation1] sm:$0xff]
    %2741 = vst [vmem:[#allocation1] ss:$9 sm:$0xff] %v2474
    %2742 = vst [vmem:[%s2699] ss:$9 sm:$0xff] %v2475
    %2743 = vst [vmem:[%s2701] ss:$9 sm:$0xff] %v2476
    %2744 = vst [vmem:[%s2703] ss:$9 sm:$0xff] %v2477
    %2745 = vst [vmem:[%s2705] ss:$9 sm:$0xff] %v2478
    %2746 = vst [vmem:[%s2707] ss:$9 sm:$0xff] %v2479
    %2747 = vst [vmem:[%s2709] ss:$9 sm:$0xff] %v2480
    %2748 = vst [vmem:[%s2711] ss:$9 sm:$0xff] %v2481
    %v2749 = vld [vmem:[#allocation1] sm:$0xff]
    %2750 = vst [vmem:[#allocation1] ss:$9 sm:$0xff] %v2482
    %2751 = vst [vmem:[%s2699] ss:$9 sm:$0xff] %v2483
    %2752 = vst [vmem:[%s2701] ss:$9 sm:$0xff] %v2484
    %2753 = vst [vmem:[%s2703] ss:$9 sm:$0xff] %v2485
    %2754 = vst [vmem:[%s2705] ss:$9 sm:$0xff] %v2486
    %2755 = vst [vmem:[%s2707] ss:$9 sm:$0xff] %v2487
    %2756 = vst [vmem:[%s2709] ss:$9 sm:$0xff] %v2488
    %2757 = vst [vmem:[%s2711] ss:$9 sm:$0xff] %v2489
    %v2758 = vld [vmem:[#allocation1] sm:$0xff]
    %2759 = vst [vmem:[#allocation1] ss:$9 sm:$0xff] %v2490
    %2760 = vst [vmem:[%s2699] ss:$9 sm:$0xff] %v2491
    %2761 = vst [vmem:[%s2701] ss:$9 sm:$0xff] %v2492
    %2762 = vst [vmem:[%s2703] ss:$9 sm:$0xff] %v2493
    %2763 = vst [vmem:[%s2705] ss:$9 sm:$0xff] %v2494
    %2764 = vst [vmem:[%s2707] ss:$9 sm:$0xff] %v2495
    %2765 = vst [vmem:[%s2709] ss:$9 sm:$0xff] %v2496
    %2766 = vst [vmem:[%s2711] ss:$9 sm:$0xff] %v2497
    %v2767 = vld [vmem:[#allocation1] sm:$0xff]
    %2768 = vst [vmem:[#allocation1] ss:$9 sm:$0xff] %v2498
    %2769 = vst [vmem:[%s2699] ss:$9 sm:$0xff] %v2499
    %2770 = vst [vmem:[%s2701] ss:$9 sm:$0xff] %v2500
    %2771 = vst [vmem:[%s2703] ss:$9 sm:$0xff] %v2501
    %2772 = vst [vmem:[%s2705] ss:$9 sm:$0xff] %v2502
    %2773 = vst [vmem:[%s2707] ss:$9 sm:$0xff] %v2503
    %2774 = vst [vmem:[%s2709] ss:$9 sm:$0xff] %v2504
    %2775 = vst [vmem:[%s2711] ss:$9 sm:$0xff] %v2505
    %v2776 = vld [vmem:[#allocation1] sm:$0xff]
    %2777 = vst [vmem:[#allocation1] ss:$9 sm:$0xff] %v2506
    %2778 = vst [vmem:[%s2699] ss:$9 sm:$0xff] %v2507
    %2779 = vst [vmem:[%s2701] ss:$9 sm:$0xff] %v2508
    %2780 = vst [vmem:[%s2703] ss:$9 sm:$0xff] %v2509
    %2781 = vst [vmem:[%s2705] ss:$9 sm:$0xff] %v2510
    %2782 = vst [vmem:[%s2707] ss:$9 sm:$0xff] %v2511
    %2783 = vst [vmem:[%s2709] ss:$9 sm:$0xff] %v2512
    %2784 = vst [vmem:[%s2711] ss:$9 sm:$0xff] %v2513
    %v2785 = vld [vmem:[#allocation1] sm:$0xff]
    %2786 = vst [vmem:[#allocation1] ss:$9 sm:$0xff] %v2514
    %2787 = vst [vmem:[%s2699] ss:$9 sm:$0xff] %v2515
    %2788 = vst [vmem:[%s2701] ss:$9 sm:$0xff] %v2516
    %2789 = vst [vmem:[%s2703] ss:$9 sm:$0xff] %v2517
    %2790 = vst [vmem:[%s2705] ss:$9 sm:$0xff] %v2518
    %2791 = vst [vmem:[%s2707] ss:$9 sm:$0xff] %v2519
    %2792 = vst [vmem:[%s2709] ss:$9 sm:$0xff] %v2520
    %2793 = vst [vmem:[%s2711] ss:$9 sm:$0xff] %v2521
    %v2794 = vld [vmem:[#allocation1] sm:$0xff]
    %2795 = vst [vmem:[#allocation1] ss:$9 sm:$0xff] %v2522
    %2796 = vst [vmem:[%s2699] ss:$9 sm:$0xff] %v2523
    %2797 = vst [vmem:[%s2701] ss:$9 sm:$0xff] %v2524
    %2798 = vst [vmem:[%s2703] ss:$9 sm:$0xff] %v2525
    %2799 = vst [vmem:[%s2705] ss:$9 sm:$0xff] %v2526
    %2800 = vst [vmem:[%s2707] ss:$9 sm:$0xff] %v2527
    %2801 = vst [vmem:[%s2709] ss:$9 sm:$0xff] %v2528
    %2802 = vst [vmem:[%s2711] ss:$9 sm:$0xff] %v2529
    %v2803 = vld [vmem:[#allocation1] sm:$0xff]
    %2804 = vst [vmem:[#allocation1] ss:$9 sm:$0xff] %v2530
    %2805 = vst [vmem:[%s2699] ss:$9 sm:$0xff] %v2531
    %2806 = vst [vmem:[%s2701] ss:$9 sm:$0xff] %v2532
    %2807 = vst [vmem:[%s2703] ss:$9 sm:$0xff] %v2533
    %2808 = vst [vmem:[%s2705] ss:$9 sm:$0xff] %v2534
    %2809 = vst [vmem:[%s2707] ss:$9 sm:$0xff] %v2535
    %2810 = vst [vmem:[%s2709] ss:$9 sm:$0xff] %v2536
    %2811 = vst [vmem:[%s2711] ss:$9 sm:$0xff] %v2537
    %v2812 = vld [vmem:[#allocation1] sm:$0xff]
    %2813 = vst [vmem:[#allocation1] ss:$9 sm:$0xff] %v2538
    %2814 = vst [vmem:[%s2699] ss:$9 sm:$0xff] %v2539
    %2815 = vst [vmem:[%s2701] ss:$9 sm:$0xff] %v2540
    %2816 = vst [vmem:[%s2703] ss:$9 sm:$0xff] %v2541
    %2817 = vst [vmem:[%s2705] ss:$9 sm:$0xff] %v2542
    %2818 = vst [vmem:[%s2707] ss:$9 sm:$0xff] %v2543
    %2819 = vst [vmem:[%s2709] ss:$9 sm:$0xff] %v2544
    %2820 = vst [vmem:[%s2711] ss:$9 sm:$0xff] %v2545
    %v2821 = vld [vmem:[#allocation1] sm:$0xff]
    %2822 = vst [vmem:[#allocation1] ss:$9 sm:$0xff] %v2546
    %2823 = vst [vmem:[%s2699] ss:$9 sm:$0xff] %v2547
    %2824 = vst [vmem:[%s2701] ss:$9 sm:$0xff] %v2548
    %2825 = vst [vmem:[%s2703] ss:$9 sm:$0xff] %v2549
    %2826 = vst [vmem:[%s2705] ss:$9 sm:$0xff] %v2550
    %2827 = vst [vmem:[%s2707] ss:$9 sm:$0xff] %v2551
    %2828 = vst [vmem:[%s2709] ss:$9 sm:$0xff] %v2552
    %2829 = vst [vmem:[%s2711] ss:$9 sm:$0xff] %v2553
    %v2830 = vld [vmem:[#allocation1] sm:$0xff]
    %2831 = vst [vmem:[#allocation1] ss:$9 sm:$0xff] %v2554
    %2832 = vst [vmem:[%s2699] ss:$9 sm:$0xff] %v2555
    %2833 = vst [vmem:[%s2701] ss:$9 sm:$0xff] %v2556
    %2834 = vst [vmem:[%s2703] ss:$9 sm:$0xff] %v2557
    %2835 = vst [vmem:[%s2705] ss:$9 sm:$0xff] %v2558
    %2836 = vst [vmem:[%s2707] ss:$9 sm:$0xff] %v2559
    %2837 = vst [vmem:[%s2709] ss:$9 sm:$0xff] %v2560
    %2838 = vst [vmem:[%s2711] ss:$9 sm:$0xff] %v2561
    %v2839 = vld [vmem:[#allocation1] sm:$0xff]
    %2840 = vst [vmem:[#allocation1] ss:$9 sm:$0xff] %v2562
    %2841 = vst [vmem:[%s2699] ss:$9 sm:$0xff] %v2563
    %2842 = vst [vmem:[%s2701] ss:$9 sm:$0xff] %v2564
    %2843 = vst [vmem:[%s2703] ss:$9 sm:$0xff] %v2565
    %2844 = vst [vmem:[%s2705] ss:$9 sm:$0xff] %v2566
    %2845 = vst [vmem:[%s2707] ss:$9 sm:$0xff] %v2567
    %2846 = vst [vmem:[%s2709] ss:$9 sm:$0xff] %v2568
    %2847 = vst [vmem:[%s2711] ss:$9 sm:$0xff] %v2569
    %v2848 = vld [vmem:[#allocation1] sm:$0xff]
    %2849 = vst [vmem:[#allocation1] ss:$9 sm:$0xff] %v2570
    %2850 = vst [vmem:[%s2699] ss:$9 sm:$0xff] %v2571
    %2851 = vst [vmem:[%s2701] ss:$9 sm:$0xff] %v2572
    %2852 = vst [vmem:[%s2703] ss:$9 sm:$0xff] %v2573
    %2853 = vst [vmem:[%s2705] ss:$9 sm:$0xff] %v2574
    %2854 = vst [vmem:[%s2707] ss:$9 sm:$0xff] %v2575
    %2855 = vst [vmem:[%s2709] ss:$9 sm:$0xff] %v2576
    %2856 = vst [vmem:[%s2711] ss:$9 sm:$0xff] %v2577
    %v2857 = vld [vmem:[#allocation1] sm:$0xff]
    %2858 = vst [vmem:[#allocation1] ss:$9 sm:$0xff] %v2578
    %2859 = vst [vmem:[%s2699] ss:$9 sm:$0xff] %v2579
    %2860 = vst [vmem:[%s2701] ss:$9 sm:$0xff] %v2580
    %2861 = vst [vmem:[%s2703] ss:$9 sm:$0xff] %v2581
    %2862 = vst [vmem:[%s2705] ss:$9 sm:$0xff] %v2582
    %2863 = vst [vmem:[%s2707] ss:$9 sm:$0xff] %v2583
    %2864 = vst [vmem:[%s2709] ss:$9 sm:$0xff] %v2584
    %2865 = vst [vmem:[%s2711] ss:$9 sm:$0xff] %v2585
    %v2866 = vld [vmem:[#allocation1] sm:$0xff]
    %2867 = vst [vmem:[#allocation1] ss:$9 sm:$0xff] %v2586
    %2868 = vst [vmem:[%s2699] ss:$9 sm:$0xff] %v2587
    %2869 = vst [vmem:[%s2701] ss:$9 sm:$0xff] %v2588
    %2870 = vst [vmem:[%s2703] ss:$9 sm:$0xff] %v2589
    %2871 = vst [vmem:[%s2705] ss:$9 sm:$0xff] %v2590
    %2872 = vst [vmem:[%s2707] ss:$9 sm:$0xff] %v2591
    %2873 = vst [vmem:[%s2709] ss:$9 sm:$0xff] %v2592
    %2874 = vst [vmem:[%s2711] ss:$9 sm:$0xff] %v2593
    %v2875 = vld [vmem:[#allocation1] sm:$0xff]
    %2876 = vst [vmem:[#allocation1] ss:$9 sm:$0xff] %v2594
    %2877 = vst [vmem:[%s2699] ss:$9 sm:$0xff] %v2595
    %2878 = vst [vmem:[%s2701] ss:$9 sm:$0xff] %v2596
    %2879 = vst [vmem:[%s2703] ss:$9 sm:$0xff] %v2597
    %2880 = vst [vmem:[%s2705] ss:$9 sm:$0xff] %v2598
    %2881 = vst [vmem:[%s2707] ss:$9 sm:$0xff] %v2599
    %2882 = vst [vmem:[%s2709] ss:$9 sm:$0xff] %v2600
    %2883 = vst [vmem:[%s2711] ss:$9 sm:$0xff] %v2601
    %v2884 = vld [vmem:[#allocation1] sm:$0xff]
    %2885 = vst [vmem:[#allocation1] ss:$9 sm:$0xff] %v2602
    %2886 = vst [vmem:[%s2699] ss:$9 sm:$0xff] %v2603
    %2887 = vst [vmem:[%s2701] ss:$9 sm:$0xff] %v2604
    %2888 = vst [vmem:[%s2703] ss:$9 sm:$0xff] %v2605
    %2889 = vst [vmem:[%s2705] ss:$9 sm:$0xff] %v2606
    %2890 = vst [vmem:[%s2707] ss:$9 sm:$0xff] %v2607
    %2891 = vst [vmem:[%s2709] ss:$9 sm:$0xff] %v2608
    %2892 = vst [vmem:[%s2711] ss:$9 sm:$0xff] %v2609
    %v2893 = vld [vmem:[#allocation1] sm:$0xff]
    %2894 = vst [vmem:[#allocation1] ss:$9 sm:$0xff] %v2610
    %2895 = vst [vmem:[%s2699] ss:$9 sm:$0xff] %v2611
    %2896 = vst [vmem:[%s2701] ss:$9 sm:$0xff] %v2612
    %2897 = vst [vmem:[%s2703] ss:$9 sm:$0xff] %v2613
    %2898 = vst [vmem:[%s2705] ss:$9 sm:$0xff] %v2614
    %2899 = vst [vmem:[%s2707] ss:$9 sm:$0xff] %v2615
    %2900 = vst [vmem:[%s2709] ss:$9 sm:$0xff] %v2616
    %2901 = vst [vmem:[%s2711] ss:$9 sm:$0xff] %v2617
    %v2902 = vld [vmem:[#allocation1] sm:$0xff]
    %2903 = vst [vmem:[#allocation1] ss:$9 sm:$0xff] %v2618
    %2904 = vst [vmem:[%s2699] ss:$9 sm:$0xff] %v2619
    %2905 = vst [vmem:[%s2701] ss:$9 sm:$0xff] %v2620
    %2906 = vst [vmem:[%s2703] ss:$9 sm:$0xff] %v2621
    %2907 = vst [vmem:[%s2705] ss:$9 sm:$0xff] %v2622
    %2908 = vst [vmem:[%s2707] ss:$9 sm:$0xff] %v2623
    %2909 = vst [vmem:[%s2709] ss:$9 sm:$0xff] %v2624
    %2910 = vst [vmem:[%s2711] ss:$9 sm:$0xff] %v2625
    %v2911 = vld [vmem:[#allocation1] sm:$0xff]
    %2912 = vst [vmem:[#allocation1] ss:$9 sm:$0xff] %v2626
    %2913 = vst [vmem:[%s2699] ss:$9 sm:$0xff] %v2627
    %2914 = vst [vmem:[%s2701] ss:$9 sm:$0xff] %v2628
    %2915 = vst [vmem:[%s2703] ss:$9 sm:$0xff] %v2629
    %2916 = vst [vmem:[%s2705] ss:$9 sm:$0xff] %v2630
    %2917 = vst [vmem:[%s2707] ss:$9 sm:$0xff] %v2631
    %2918 = vst [vmem:[%s2709] ss:$9 sm:$0xff] %v2632
    %2919 = vst [vmem:[%s2711] ss:$9 sm:$0xff] %v2633
    %v2920 = vld [vmem:[#allocation1] sm:$0xff]
    %2921 = vst [vmem:[#allocation1] ss:$9 sm:$0xff] %v2634
    %2922 = vst [vmem:[%s2699] ss:$9 sm:$0xff] %v2635
    %2923 = vst [vmem:[%s2701] ss:$9 sm:$0xff] %v2636
    %2924 = vst [vmem:[%s2703] ss:$9 sm:$0xff] %v2637
    %2925 = vst [vmem:[%s2705] ss:$9 sm:$0xff] %v2638
    %2926 = vst [vmem:[%s2707] ss:$9 sm:$0xff] %v2639
    %2927 = vst [vmem:[%s2709] ss:$9 sm:$0xff] %v2640
    %2928 = vst [vmem:[%s2711] ss:$9 sm:$0xff] %v2641
    %v2929 = vld [vmem:[#allocation1] sm:$0xff]
    %2930 = vst [vmem:[#allocation1] ss:$9 sm:$0xff] %v2642
    %2931 = vst [vmem:[%s2699] ss:$9 sm:$0xff] %v2643
    %2932 = vst [vmem:[%s2701] ss:$9 sm:$0xff] %v2644
    %2933 = vst [vmem:[%s2703] ss:$9 sm:$0xff] %v2645
    %2934 = vst [vmem:[%s2705] ss:$9 sm:$0xff] %v2646
    %2935 = vst [vmem:[%s2707] ss:$9 sm:$0xff] %v2647
    %2936 = vst [vmem:[%s2709] ss:$9 sm:$0xff] %v2648
    %2937 = vst [vmem:[%s2711] ss:$9 sm:$0xff] %v2649
    %v2938 = vld [vmem:[#allocation1] sm:$0xff]
    %2939 = vst [vmem:[#allocation1] ss:$9 sm:$0xff] %v2650
    %2940 = vst [vmem:[%s2699] ss:$9 sm:$0xff] %v2651
    %2941 = vst [vmem:[%s2701] ss:$9 sm:$0xff] %v2652
    %2942 = vst [vmem:[%s2703] ss:$9 sm:$0xff] %v2653
    %2943 = vst [vmem:[%s2705] ss:$9 sm:$0xff] %v2654
    %2944 = vst [vmem:[%s2707] ss:$9 sm:$0xff] %v2655
    %2945 = vst [vmem:[%s2709] ss:$9 sm:$0xff] %v2656
    %2946 = vst [vmem:[%s2711] ss:$9 sm:$0xff] %v2657
    %v2947 = vld [vmem:[#allocation1] sm:$0xff]
    %2948 = vst [vmem:[#allocation1] ss:$9 sm:$0xff] %v2658
    %2949 = vst [vmem:[%s2699] ss:$9 sm:$0xff] %v2659
    %2950 = vst [vmem:[%s2701] ss:$9 sm:$0xff] %v2660
    %2951 = vst [vmem:[%s2703] ss:$9 sm:$0xff] %v2661
    %2952 = vst [vmem:[%s2705] ss:$9 sm:$0xff] %v2662
    %2953 = vst [vmem:[%s2707] ss:$9 sm:$0xff] %v2663
    %2954 = vst [vmem:[%s2709] ss:$9 sm:$0xff] %v2664
    %2955 = vst [vmem:[%s2711] ss:$9 sm:$0xff] %v2665
    %v2956 = vld [vmem:[#allocation1] sm:$0xff]
    %2957 = vst [vmem:[#allocation1] ss:$9 sm:$0xff] %v2666
    %2958 = vst [vmem:[%s2699] ss:$9 sm:$0xff] %v2667
    %2959 = vst [vmem:[%s2701] ss:$9 sm:$0xff] %v2668
    %2960 = vst [vmem:[%s2703] ss:$9 sm:$0xff] %v2669
    %2961 = vst [vmem:[%s2705] ss:$9 sm:$0xff] %v2670
    %2962 = vst [vmem:[%s2707] ss:$9 sm:$0xff] %v2671
    %2963 = vst [vmem:[%s2709] ss:$9 sm:$0xff] %v2672
    %2964 = vst [vmem:[%s2711] ss:$9 sm:$0xff] %v2673
    %v2965 = vld [vmem:[#allocation1] sm:$0xff]
    %2966 = vst [vmem:[#allocation1] ss:$9 sm:$0xff] %v2674
    %2967 = vst [vmem:[%s2699] ss:$9 sm:$0xff] %v2675
    %2968 = vst [vmem:[%s2701] ss:$9 sm:$0xff] %v2676
    %2969 = vst [vmem:[%s2703] ss:$9 sm:$0xff] %v2677
    %2970 = vst [vmem:[%s2705] ss:$9 sm:$0xff] %v2678
    %2971 = vst [vmem:[%s2707] ss:$9 sm:$0xff] %v2679
    %2972 = vst [vmem:[%s2709] ss:$9 sm:$0xff] %v2680
    %2973 = vst [vmem:[%s2711] ss:$9 sm:$0xff] %v2681
    %v2974 = vld [vmem:[#allocation1] sm:$0xff]
    %2975 = vst [vmem:[#allocation1] ss:$9 sm:$0xff] %v2682
    %2976 = vst [vmem:[%s2699] ss:$9 sm:$0xff] %v2683
    %2977 = vst [vmem:[%s2701] ss:$9 sm:$0xff] %v2684
    %2978 = vst [vmem:[%s2703] ss:$9 sm:$0xff] %v2685
    %2979 = vst [vmem:[%s2705] ss:$9 sm:$0xff] %v2686
    %2980 = vst [vmem:[%s2707] ss:$9 sm:$0xff] %v2687
    %2981 = vst [vmem:[%s2709] ss:$9 sm:$0xff] %v2688
    %2982 = vst [vmem:[%s2711] ss:$9 sm:$0xff] %v2689
    %v2983 = vld [vmem:[#allocation1] sm:$0xff]
    %2984 = vst [vmem:[#allocation1] ss:$9 sm:$0xff] %v2690
    %2985 = vst [vmem:[%s2699] ss:$9 sm:$0xff] %v2691
    %2986 = vst [vmem:[%s2701] ss:$9 sm:$0xff] %v2692
    %2987 = vst [vmem:[%s2703] ss:$9 sm:$0xff] %v2693
    %2988 = vst [vmem:[%s2705] ss:$9 sm:$0xff] %v2694
    %2989 = vst [vmem:[%s2707] ss:$9 sm:$0xff] %v2695
    %2990 = vst [vmem:[%s2709] ss:$9 sm:$0xff] %v2696
    %2991 = vst [vmem:[%s2711] ss:$9 sm:$0xff] %v2697
    %v2992 = vld [vmem:[#allocation1] sm:$0xff]
    %2993 = vset.pattern.permute.xlu0 0
    %2994 = vperm.xlu0 %2993, %v2713
    %v2995 = vpop.permute.xlu0 %2994
    %2996 = vset.pattern.permute.xlu0 0
    %2997 = vperm.xlu0 %2996, %v2722
    %v2998 = vpop.permute.xlu0 %2997
    %2999 = vset.pattern.permute.xlu0 0
    %3000 = vperm.xlu0 %2999, %v2731
    %v3001 = vpop.permute.xlu0 %3000
    %3002 = vset.pattern.permute.xlu0 0
    %3003 = vperm.xlu0 %3002, %v2740
    %v3004 = vpop.permute.xlu0 %3003
    %3005 = vset.pattern.permute.xlu0 0
    %3006 = vperm.xlu0 %3005, %v2749
    %v3007 = vpop.permute.xlu0 %3006
    %3008 = vset.pattern.permute.xlu0 0
    %3009 = vperm.xlu0 %3008, %v2758
    %v3010 = vpop.permute.xlu0 %3009
    %3011 = vset.pattern.permute.xlu0 0
    %3012 = vperm.xlu0 %3011, %v2767
    %v3013 = vpop.permute.xlu0 %3012
    %3014 = vset.pattern.permute.xlu0 0
    %3015 = vperm.xlu0 %3014, %v2776
    %v3016 = vpop.permute.xlu0 %3015
    %3017 = vset.pattern.permute.xlu0 0
    %3018 = vperm.xlu0 %3017, %v2785
    %v3019 = vpop.permute.xlu0 %3018
    %3020 = vset.pattern.permute.xlu0 0
    %3021 = vperm.xlu0 %3020, %v2794
    %v3022 = vpop.permute.xlu0 %3021
    %3023 = vset.pattern.permute.xlu0 0
    %3024 = vperm.xlu0 %3023, %v2803
    %v3025 = vpop.permute.xlu0 %3024
    %3026 = vset.pattern.permute.xlu0 0
    %3027 = vperm.xlu0 %3026, %v2812
    %v3028 = vpop.permute.xlu0 %3027
    %3029 = vset.pattern.permute.xlu0 0
    %3030 = vperm.xlu0 %3029, %v2821
    %v3031 = vpop.permute.xlu0 %3030
    %3032 = vset.pattern.permute.xlu0 0
    %3033 = vperm.xlu0 %3032, %v2830
    %v3034 = vpop.permute.xlu0 %3033
    %3035 = vset.pattern.permute.xlu0 0
    %3036 = vperm.xlu0 %3035, %v2839
    %v3037 = vpop.permute.xlu0 %3036
    %3038 = vset.pattern.permute.xlu0 0
    %3039 = vperm.xlu0 %3038, %v2848
    %v3040 = vpop.permute.xlu0 %3039
    %3041 = vset.pattern.permute.xlu0 0
    %3042 = vperm.xlu0 %3041, %v2857
    %v3043 = vpop.permute.xlu0 %3042
    %3044 = vset.pattern.permute.xlu0 0
    %3045 = vperm.xlu0 %3044, %v2866
    %v3046 = vpop.permute.xlu0 %3045
    %3047 = vset.pattern.permute.xlu0 0
    %3048 = vperm.xlu0 %3047, %v2875
    %v3049 = vpop.permute.xlu0 %3048
    %3050 = vset.pattern.permute.xlu0 0
    %3051 = vperm.xlu0 %3050, %v2884
    %v3052 = vpop.permute.xlu0 %3051
    %3053 = vset.pattern.permute.xlu0 0
    %3054 = vperm.xlu0 %3053, %v2893
    %v3055 = vpop.permute.xlu0 %3054
    %3056 = vset.pattern.permute.xlu0 0
    %3057 = vperm.xlu0 %3056, %v2902
    %v3058 = vpop.permute.xlu0 %3057
    %3059 = vset.pattern.permute.xlu0 0
    %3060 = vperm.xlu0 %3059, %v2911
    %v3061 = vpop.permute.xlu0 %3060
    %3062 = vset.pattern.permute.xlu0 0
    %3063 = vperm.xlu0 %3062, %v2920
    %v3064 = vpop.permute.xlu0 %3063
    %3065 = vset.pattern.permute.xlu0 0
    %3066 = vperm.xlu0 %3065, %v2929
    %v3067 = vpop.permute.xlu0 %3066
    %3068 = vset.pattern.permute.xlu0 0
    %3069 = vperm.xlu0 %3068, %v2938
    %v3070 = vpop.permute.xlu0 %3069
    %3071 = vset.pattern.permute.xlu0 0
    %3072 = vperm.xlu0 %3071, %v2947
    %v3073 = vpop.permute.xlu0 %3072
    %3074 = vset.pattern.permute.xlu0 0
    %3075 = vperm.xlu0 %3074, %v2956
    %v3076 = vpop.permute.xlu0 %3075
    %3077 = vset.pattern.permute.xlu0 0
    %3078 = vperm.xlu0 %3077, %v2965
    %v3079 = vpop.permute.xlu0 %3078
    %3080 = vset.pattern.permute.xlu0 0
    %3081 = vperm.xlu0 %3080, %v2974
    %v3082 = vpop.permute.xlu0 %3081
    %3083 = vset.pattern.permute.xlu0 0
    %3084 = vperm.xlu0 %3083, %v2983
    %v3085 = vpop.permute.xlu0 %3084
    %3086 = vset.pattern.permute.xlu0 0
    %3087 = vperm.xlu0 %3086, %v2992
    %v3088 = vpop.permute.xlu0 %3087
    %v3089 = vlaneseq
    %v3090 = vand.u32 %v3089, 127
    %v3091 = vperm.slane %v2995, %v3090
    %v3092 = vadd.s32 %v3090, 4294967288
    %v3093 = vperm.slane %v2998, %v3092
    %vm3094 = vcmask 130112
    %v3095 = vsel %vm3094, %v3093, %v3091
    %v3096 = vadd.s32 %v3090, 4294967280
    %v3097 = vperm.slane %v3001, %v3096
    %vm3098 = vcmask 195712
    %v3099 = vsel %vm3098, %v3097, %v3095
    %v3100 = vadd.s32 %v3090, 4294967272
    %v3101 = vperm.slane %v3004, %v3100
    %vm3102 = vcmask 261312
    %v3103 = vsel %vm3102, %v3101, %v3099
    %v3104 = vadd.s32 %v3090, 4294967264
    %v3105 = vperm.slane %v3007, %v3104
    %vm3106 = vcmask 326912
    %v3107 = vsel %vm3106, %v3105, %v3103
    %v3108 = vadd.s32 %v3090, 4294967256
    %v3109 = vperm.slane %v3010, %v3108
    %vm3110 = vcmask 392512
    %v3111 = vsel %vm3110, %v3109, %v3107
    %v3112 = vadd.s32 %v3090, 4294967248
    %v3113 = vperm.slane %v3013, %v3112
    %vm3114 = vcmask 458112
    %v3115 = vsel %vm3114, %v3113, %v3111
    %v3116 = vadd.s32 %v3090, 4294967240
    %v3117 = vperm.slane %v3016, %v3116
    %vm3118 = vcmask 523712
    %v3119 = vsel %vm3118, %v3117, %v3115
    %v3120 = vadd.s32 %v3090, 4294967232
    %v3121 = vperm.slane %v3019, %v3120
    %vm3122 = vcmask 589312
    %v3123 = vsel %vm3122, %v3121, %v3119
    %v3124 = vadd.s32 %v3090, 4294967224
    %v3125 = vperm.slane %v3022, %v3124
    %vm3126 = vcmask 654912
    %v3127 = vsel %vm3126, %v3125, %v3123
    %v3128 = vadd.s32 %v3090, 4294967216
    %v3129 = vperm.slane %v3025, %v3128
    %vm3130 = vcmask 720512
    %v3131 = vsel %vm3130, %v3129, %v3127
    %v3132 = vadd.s32 %v3090, 4294967208
    %v3133 = vperm.slane %v3028, %v3132
    %vm3134 = vcmask 786112
    %v3135 = vsel %vm3134, %v3133, %v3131
    %v3136 = vadd.s32 %v3090, 4294967200
    %v3137 = vperm.slane %v3031, %v3136
    %vm3138 = vcmask 851712
    %v3139 = vsel %vm3138, %v3137, %v3135
    %v3140 = vadd.s32 %v3090, 4294967192
    %v3141 = vperm.slane %v3034, %v3140
    %vm3142 = vcmask 917312
    %v3143 = vsel %vm3142, %v3141, %v3139
    %v3144 = vadd.s32 %v3090, 4294967184
    %v3145 = vperm.slane %v3037, %v3144
    %vm3146 = vcmask 982912
    %v3147 = vsel %vm3146, %v3145, %v3143
    %v3148 = vadd.s32 %v3090, 4294967176
    %v3149 = vperm.slane %v3040, %v3148
    %vm3150 = vcmask 1048512
    %v3151 = vsel %vm3150, %v3149, %v3147
    %v3152 = vperm.slane %v3043, %v3090
    %v3153 = vperm.slane %v3046, %v3092
    %v3154 = vsel %vm3094, %v3153, %v3152
    %v3155 = vperm.slane %v3049, %v3096
    %v3156 = vsel %vm3098, %v3155, %v3154
    %v3157 = vperm.slane %v3052, %v3100
    %v3158 = vsel %vm3102, %v3157, %v3156
    %v3159 = vperm.slane %v3055, %v3104
    %v3160 = vsel %vm3106, %v3159, %v3158
    %v3161 = vperm.slane %v3058, %v3108
    %v3162 = vsel %vm3110, %v3161, %v3160
    %v3163 = vperm.slane %v3061, %v3112
    %v3164 = vsel %vm3114, %v3163, %v3162
    %v3165 = vperm.slane %v3064, %v3116
    %v3166 = vsel %vm3118, %v3165, %v3164
    %v3167 = vperm.slane %v3067, %v3120
    %v3168 = vsel %vm3122, %v3167, %v3166
    %v3169 = vperm.slane %v3070, %v3124
    %v3170 = vsel %vm3126, %v3169, %v3168
    %v3171 = vperm.slane %v3073, %v3128
    %v3172 = vsel %vm3130, %v3171, %v3170
    %v3173 = vperm.slane %v3076, %v3132
    %v3174 = vsel %vm3134, %v3173, %v3172
    %v3175 = vperm.slane %v3079, %v3136
    %v3176 = vsel %vm3138, %v3175, %v3174
    %v3177 = vperm.slane %v3082, %v3140
    %v3178 = vsel %vm3142, %v3177, %v3176
    %v3179 = vperm.slane %v3085, %v3144
    %v3180 = vsel %vm3146, %v3179, %v3178
    %v3181 = vperm.slane %v3088, %v3148
    %v3182 = vsel %vm3150, %v3181, %v3180
    %v3183 = vrot.slane %v3182, 7
    %vm3184 = vcmask 1040384
    %v3185 = vsel %vm3184, %v3151, %v3183
    %v3187 = vlaneseq
    %vm3188 = vcmp.ge.s32.totalorder %v3187, 0
    %vm3189 = vcmp.lt.s32.totalorder %v3187, 256
    %vm3190 = vmand %vm3188, %vm3189
    %3191 = vst.msk [vmem:[#allocation3] sm:$0x3] %vm3190, %v3185
    // Predicated region
    $region30: #{tpu_custom_call.1} parent=1 // pred_check
      _
    $region31: #{tpu_custom_call.1} parent=1 // pred_check_branch
      %3193 = sbr.rel (0) target = $region33
    $region32: #{tpu_custom_call.1} parent=1 // pred_region
      %3195 = vsyncadd [#allocation4], 0
      %s3197 = sshll.u32 [#allocation3], 4
      %s3198 = int_to_ptr.vmem [resolvable:$true] %s3197
      %s3199 = sshll.u32 %s7, 4
      %s3200 = int_to_ptr.hbm [resolvable:$true] %s3199
      %3202 = dma.vmem_to_hbm [thread:$0]  %s3198, 32, %s3200, [#allocation4]
    $region33: #{tpu_custom_call.1} parent=1 // pred_fallthru
      _
    // Predicated region
    $region34: #{tpu_custom_call.1} parent=1 // pred_check
      _
    $region35: #{tpu_custom_call.1} parent=1 // pred_check_branch
      %3204 = sbr.rel (0) target = $region37
    $region36: #{tpu_custom_call.1} parent=1 // pred_region
      %3206 = dma.done [#allocation4], 32
    $region37: #{tpu_custom_call.1} parent=1 // pred_fallthru
      _
    %3207 = vsyncpa [#allocation4], 1

</llo_original>
